<compile_context>
chip_gen: v6e
topology: v6e:2x2x1
jax: 0.10.0
libtpu: 0.0.40
codegen_flags: <defaults>
</compile_context>

<pallas_src>
import math
import jax
import jax.numpy as jnp
from jax import lax
from jax.experimental import pallas as pl
from jax.experimental.pallas import tpu as pltpu


def _gelu_exact(x):
    # matches torch.nn.GELU() default (erf-based); kept exact for torch parity
    return 0.5 * x * (1.0 + lax.erf(x * (1.0 / math.sqrt(2.0))))


def cosmology_kernel(x_ref,                 # [3, T]  node positions (nodes on lanes)
                     we_ref, be_ref,        # embedding: (in_dim, 3), (in_dim, 1)
                     wm_ref, bm_ref,        # main model: (out_dim, in_dim), (out_dim, 1)
                     w1_ref, b1_ref,        # pred_head[0]: (out_dim, out_dim), (out_dim, 1)
                     w2_ref, b2_ref,        # pred_head[2]: (3, out_dim), (3, 1)
                     out_ref):              # [3, T]
    x = x_ref[...]                                                           # [3, T]

    # Embedding: We @ X + be
    h = jnp.dot(we_ref[...], x, preferred_element_type=jnp.float32) + be_ref[...]

    # Synthetic main model: Linear + GELU
    h = jnp.dot(wm_ref[...], h, preferred_element_type=jnp.float32) + bm_ref[...]
    h = _gelu_exact(h)

    # pred_head: Linear -> GELU -> Linear
    h = jnp.dot(w1_ref[...], h, preferred_element_type=jnp.float32) + b1_ref[...]
    h = _gelu_exact(h)
    out = jnp.dot(w2_ref[...], h, preferred_element_type=jnp.float32) + b2_ref[...]

    out_ref[...] = out.astype(out_ref.dtype)


def cosmology_forward(pos, params, *, tile_n=1024):
    """pos: [N, 3] float32. Returns [N, 3] float32."""
    N, three = pos.shape
    assert three == 3
    assert tile_n % 128 == 0
    we, be, wm, bm, w1, b1, w2, b2 = params
    in_dim = we.shape[0]
    out_dim = wm.shape[0]

    # Lane-dense layout: nodes on the 128-lane axis.
    pos_t = pos.T                                      # [3, N]
    n_pad = (-N) % tile_n
    if n_pad:
        pos_t = jnp.pad(pos_t, ((0, 0), (0, n_pad)))
    Np = N + n_pad
    grid_n = Np // tile_n

    # Weights/biases: constant index_map -> grid-resident in VMEM (loaded once,
    # reused every grid step).  Total ~13 KiB, so buffering cost is negligible.
    full = lambda shape: pl.BlockSpec(shape, lambda i: (0, 0))

    n_weight_elems = (in_dim * 3 + in_dim
                      + out_dim * in_dim + out_dim
                      + out_dim * out_dim + out_dim
                      + 3 * out_dim + 3)
    cost = pl.CostEstimate(
        flops=2 * Np * (3 * in_dim + in_dim * out_dim + out_dim * out_dim + out_dim * 3),
        transcendentals=2 * Np * out_dim,               # two GELU (erf) layers
        bytes_accessed=4 * (2 * 3 * Np + n_weight_elems),
    )

    out_t = pl.pallas_call(
        cosmology_kernel,
        out_shape=jax.ShapeDtypeStruct((3, Np), jnp.float32),
        grid_spec=pltpu.PrefetchScalarGridSpec(
            num_scalar_prefetch=0,
            grid=(grid_n,),
            in_specs=[
                pl.BlockSpec((3, tile_n), lambda i: (0, i)),   # positions (tiled over nodes)
                full((in_dim, 3)), full((in_dim, 1)),          # embedding
                full((out_dim, in_dim)), full((out_dim, 1)),   # main model
                full((out_dim, out_dim)), full((out_dim, 1)),  # head linear 1
                full((3, out_dim)), full((3, 1)),              # head linear 2
            ],
            out_specs=pl.BlockSpec((3, tile_n), lambda i: (0, i)),
        ),
        compiler_params=pltpu.CompilerParams(
            dimension_semantics=("parallel",)),
        cost_estimate=cost,
    )(pos_t, we, be, wm, bm, w1, b1, w2, b2)

    return out_t[:, :N].T


def init_params(key, in_dim, out_dim):
    """Deterministic init, PyTorch Linear-style U(-1/sqrt(fan_in), 1/sqrt(fan_in)).
    Weights are stored in torch layout (fan_out, fan_in); biases as (fan_out, 1)
    so the kernel computes W @ X + b with nodes on lanes."""
    ks = jax.random.split(key, 8)

    def lin(kw, kb, fan_in, fan_out):
        bound = 1.0 / math.sqrt(fan_in)
        w = jax.random.uniform(kw, (fan_out, fan_in), jnp.float32, -bound, bound)
        b = jax.random.uniform(kb, (fan_out, 1), jnp.float32, -bound, bound)
        return w, b

    we, be = lin(ks[0], ks[1], 3, in_dim)
    wm, bm = lin(ks[2], ks[3], in_dim, out_dim)
    w1, b1 = lin(ks[4], ks[5], out_dim, out_dim)
    w2, b2 = lin(ks[6], ks[7], out_dim, 3)
    return (we, be, wm, bm, w1, b1, w2, b2)


def reference_forward(pos, params):
    we, be, wm, bm, w1, b1, w2, b2 = params
    h = pos @ we.T + be.T
    h = _gelu_exact(h @ wm.T + bm.T)
    h = _gelu_exact(h @ w1.T + b1.T)
    return h @ w2.T + b2.T


if __name__ == "__main__":
    key = jax.random.PRNGKey(0)
    k_pos, k_params = jax.random.split(key)

    # N=4000 is ragged (pads to 4096 -> 4 grid steps with tile_n=1024, so both
    # v7x TensorCores get work); feature dims kept small.
    N, in_dim, out_dim = 4000, 32, 32
    pos = jax.random.normal(k_pos, (N, 3), jnp.float32)
    params = init_params(k_params, in_dim, out_dim)

    out = cosmology_forward(pos, params, tile_n=1024)
    out = jax.block_until_ready(out)

    ref = reference_forward(pos, params)
    assert out.shape == (N, 3)
    assert jnp.allclose(out, ref, atol=1e-5, rtol=1e-5), "mismatch vs reference"

    print("KERNEL_OK")
</pallas_src>

<mosaic_0001>
module attributes {stable_mosaic.version = 11 : i64} {
  func.func @cosmology_kernel(%arg0: i32, %arg1: memref<3x1024xf32, #tpu.memory_space<vmem>>, %arg2: memref<32x3xf32, #tpu.memory_space<vmem>>, %arg3: memref<32x1xf32, #tpu.memory_space<vmem>>, %arg4: memref<32x32xf32, #tpu.memory_space<vmem>>, %arg5: memref<32x1xf32, #tpu.memory_space<vmem>>, %arg6: memref<32x32xf32, #tpu.memory_space<vmem>>, %arg7: memref<32x1xf32, #tpu.memory_space<vmem>>, %arg8: memref<3x32xf32, #tpu.memory_space<vmem>>, %arg9: memref<3x1xf32, #tpu.memory_space<vmem>>, %arg10: memref<3x1024xf32, #tpu.memory_space<vmem>>) attributes {dimension_semantics = [#tpu.dimension_semantics<parallel>], iteration_bounds = array<i64: 4>, scalar_prefetch = 0 : i64, scratch_operands = 0 : i64, tpu.core_type = #tpu.core_type<tc>, window_params = [{transform_indices = @transform_0, window_bounds = array<i64: 3, 1024>}, {pipeline_mode = #tpu.pipeline_mode<synchronous>, transform_indices = @transform_1, window_bounds = array<i64: 32, 3>}, {pipeline_mode = #tpu.pipeline_mode<synchronous>, transform_indices = @transform_2, window_bounds = array<i64: 32, 1>}, {pipeline_mode = #tpu.pipeline_mode<synchronous>, transform_indices = @transform_3, window_bounds = array<i64: 32, 32>}, {pipeline_mode = #tpu.pipeline_mode<synchronous>, transform_indices = @transform_4, window_bounds = array<i64: 32, 1>}, {pipeline_mode = #tpu.pipeline_mode<synchronous>, transform_indices = @transform_5, window_bounds = array<i64: 32, 32>}, {pipeline_mode = #tpu.pipeline_mode<synchronous>, transform_indices = @transform_6, window_bounds = array<i64: 32, 1>}, {pipeline_mode = #tpu.pipeline_mode<synchronous>, transform_indices = @transform_7, window_bounds = array<i64: 3, 32>}, {pipeline_mode = #tpu.pipeline_mode<synchronous>, transform_indices = @transform_8, window_bounds = array<i64: 3, 1>}, {transform_indices = @transform_9, window_bounds = array<i64: 3, 1024>}]} {
    %c0 = arith.constant 0 : index
    %c0_0 = arith.constant 0 : index
    %0 = vector.load %arg1[%c0, %c0_0] : memref<3x1024xf32, #tpu.memory_space<vmem>>, vector<3x1024xf32>
    %c0_1 = arith.constant 0 : index
    %c0_2 = arith.constant 0 : index
    %1 = vector.load %arg2[%c0_1, %c0_2] : memref<32x3xf32, #tpu.memory_space<vmem>>, vector<32x3xf32>
    %cst = arith.constant dense<0.000000e+00> : vector<32x1024xf32>
    %2 = tpu.matmul %1, %0, %cst {dimension_numbers = #tpu.dot_dimension_numbers<[1], [0], [0], [1], [0, 0, 1, 1], [], []>} : vector<32x3xf32>, vector<3x1024xf32>, vector<32x1024xf32> -> vector<32x1024xf32>
    %c0_3 = arith.constant 0 : index
    %c0_4 = arith.constant 0 : index
    %3 = vector.load %arg3[%c0_3, %c0_4] : memref<32x1xf32, #tpu.memory_space<vmem>>, vector<32x1xf32>
    %4 = vector.broadcast %3 : vector<32x1xf32> to vector<32x1024xf32>
    %5 = arith.addf %2, %4 : vector<32x1024xf32>
    %c0_5 = arith.constant 0 : index
    %c0_6 = arith.constant 0 : index
    %6 = vector.load %arg4[%c0_5, %c0_6] : memref<32x32xf32, #tpu.memory_space<vmem>>, vector<32x32xf32>
    %cst_7 = arith.constant dense<0.000000e+00> : vector<32x1024xf32>
    %7 = tpu.matmul %6, %5, %cst_7 {dimension_numbers = #tpu.dot_dimension_numbers<[1], [0], [0], [1], [0, 0, 1, 1], [], []>} : vector<32x32xf32>, vector<32x1024xf32>, vector<32x1024xf32> -> vector<32x1024xf32>
    %c0_8 = arith.constant 0 : index
    %c0_9 = arith.constant 0 : index
    %8 = vector.load %arg5[%c0_8, %c0_9] : memref<32x1xf32, #tpu.memory_space<vmem>>, vector<32x1xf32>
    %9 = vector.broadcast %8 : vector<32x1xf32> to vector<32x1024xf32>
    %10 = arith.addf %7, %9 : vector<32x1024xf32>
    %cst_10 = arith.constant 5.000000e-01 : f32
    %11 = vector.broadcast %cst_10 : f32 to vector<32x1024xf32>
    %12 = arith.mulf %11, %10 : vector<32x1024xf32>
    %cst_11 = arith.constant 0.707106769 : f32
    %13 = vector.broadcast %cst_11 : f32 to vector<32x1024xf32>
    %14 = arith.mulf %10, %13 : vector<32x1024xf32>
    %15 = math.erf %14 : vector<32x1024xf32>
    %cst_12 = arith.constant 1.000000e+00 : f32
    %16 = vector.broadcast %cst_12 : f32 to vector<32x1024xf32>
    %17 = arith.addf %16, %15 : vector<32x1024xf32>
    %18 = arith.mulf %12, %17 : vector<32x1024xf32>
    %c0_13 = arith.constant 0 : index
    %c0_14 = arith.constant 0 : index
    %19 = vector.load %arg6[%c0_13, %c0_14] : memref<32x32xf32, #tpu.memory_space<vmem>>, vector<32x32xf32>
    %cst_15 = arith.constant dense<0.000000e+00> : vector<32x1024xf32>
    %20 = tpu.matmul %19, %18, %cst_15 {dimension_numbers = #tpu.dot_dimension_numbers<[1], [0], [0], [1], [0, 0, 1, 1], [], []>} : vector<32x32xf32>, vector<32x1024xf32>, vector<32x1024xf32> -> vector<32x1024xf32>
    %c0_16 = arith.constant 0 : index
    %c0_17 = arith.constant 0 : index
    %21 = vector.load %arg7[%c0_16, %c0_17] : memref<32x1xf32, #tpu.memory_space<vmem>>, vector<32x1xf32>
    %22 = vector.broadcast %21 : vector<32x1xf32> to vector<32x1024xf32>
    %23 = arith.addf %20, %22 : vector<32x1024xf32>
    %cst_18 = arith.constant 5.000000e-01 : f32
    %24 = vector.broadcast %cst_18 : f32 to vector<32x1024xf32>
    %25 = arith.mulf %24, %23 : vector<32x1024xf32>
    %cst_19 = arith.constant 0.707106769 : f32
    %26 = vector.broadcast %cst_19 : f32 to vector<32x1024xf32>
    %27 = arith.mulf %23, %26 : vector<32x1024xf32>
    %28 = math.erf %27 : vector<32x1024xf32>
    %cst_20 = arith.constant 1.000000e+00 : f32
    %29 = vector.broadcast %cst_20 : f32 to vector<32x1024xf32>
    %30 = arith.addf %29, %28 : vector<32x1024xf32>
    %31 = arith.mulf %25, %30 : vector<32x1024xf32>
    %c0_21 = arith.constant 0 : index
    %c0_22 = arith.constant 0 : index
    %32 = vector.load %arg8[%c0_21, %c0_22] : memref<3x32xf32, #tpu.memory_space<vmem>>, vector<3x32xf32>
    %cst_23 = arith.constant dense<0.000000e+00> : vector<3x1024xf32>
    %33 = tpu.matmul %32, %31, %cst_23 {dimension_numbers = #tpu.dot_dimension_numbers<[1], [0], [0], [1], [0, 0, 1, 1], [], []>} : vector<3x32xf32>, vector<32x1024xf32>, vector<3x1024xf32> -> vector<3x1024xf32>
    %c0_24 = arith.constant 0 : index
    %c0_25 = arith.constant 0 : index
    %34 = vector.load %arg9[%c0_24, %c0_25] : memref<3x1xf32, #tpu.memory_space<vmem>>, vector<3x1xf32>
    %35 = vector.broadcast %34 : vector<3x1xf32> to vector<3x1024xf32>
    %36 = arith.addf %33, %35 : vector<3x1024xf32>
    %c0_26 = arith.constant 0 : index
    %c0_27 = arith.constant 0 : index
    %37 = vector.load %arg10[%c0_26, %c0_27] : memref<3x1024xf32, #tpu.memory_space<vmem>>, vector<3x1024xf32>
    tpu.vector_store %arg10[%c0_26, %c0_27], %36 {strides = array<i32>} : memref<3x1024xf32, #tpu.memory_space<vmem>>, vector<3x1024xf32>,
    return
  }
  func.func @transform_0(%arg0: i32) -> (i32, i32) {
    %c0_i32 = arith.constant 0 : i32
    %c0_i32_0 = arith.constant 0 : i32
    return %c0_i32, %arg0 : i32, i32
  }
  func.func @transform_1(%arg0: i32) -> (i32, i32) {
    %c0_i32 = arith.constant 0 : i32
    %c0_i32_0 = arith.constant 0 : i32
    %c0_i32_1 = arith.constant 0 : i32
    return %c0_i32, %c0_i32_0 : i32, i32
  }
  func.func @transform_2(%arg0: i32) -> (i32, i32) {
    %c0_i32 = arith.constant 0 : i32
    %c0_i32_0 = arith.constant 0 : i32
    %c0_i32_1 = arith.constant 0 : i32
    return %c0_i32, %c0_i32_0 : i32, i32
  }
  func.func @transform_3(%arg0: i32) -> (i32, i32) {
    %c0_i32 = arith.constant 0 : i32
    %c0_i32_0 = arith.constant 0 : i32
    %c0_i32_1 = arith.constant 0 : i32
    return %c0_i32, %c0_i32_0 : i32, i32
  }
  func.func @transform_4(%arg0: i32) -> (i32, i32) {
    %c0_i32 = arith.constant 0 : i32
    %c0_i32_0 = arith.constant 0 : i32
    %c0_i32_1 = arith.constant 0 : i32
    return %c0_i32, %c0_i32_0 : i32, i32
  }
  func.func @transform_5(%arg0: i32) -> (i32, i32) {
    %c0_i32 = arith.constant 0 : i32
    %c0_i32_0 = arith.constant 0 : i32
    %c0_i32_1 = arith.constant 0 : i32
    return %c0_i32, %c0_i32_0 : i32, i32
  }
  func.func @transform_6(%arg0: i32) -> (i32, i32) {
    %c0_i32 = arith.constant 0 : i32
    %c0_i32_0 = arith.constant 0 : i32
    %c0_i32_1 = arith.constant 0 : i32
    return %c0_i32, %c0_i32_0 : i32, i32
  }
  func.func @transform_7(%arg0: i32) -> (i32, i32) {
    %c0_i32 = arith.constant 0 : i32
    %c0_i32_0 = arith.constant 0 : i32
    %c0_i32_1 = arith.constant 0 : i32
    return %c0_i32, %c0_i32_0 : i32, i32
  }
  func.func @transform_8(%arg0: i32) -> (i32, i32) {
    %c0_i32 = arith.constant 0 : i32
    %c0_i32_0 = arith.constant 0 : i32
    %c0_i32_1 = arith.constant 0 : i32
    return %c0_i32, %c0_i32_0 : i32, i32
  }
  func.func @transform_9(%arg0: i32) -> (i32, i32) {
    %c0_i32 = arith.constant 0 : i32
    %c0_i32_0 = arith.constant 0 : i32
    return %c0_i32, %arg0 : i32, i32
  }
}

</mosaic_0001>

<llo_original>
// kernel: tpu_custom_call.1
$region0: #{tpu_custom_call.1}
  #allocation0 [shape = 'u32[]', space=smem, size = 0x4, offset = 0x4, fixed_abs, tag = 'smem constant byte address 0x4 - core index']
  #allocation1 [shape = 'u32[144,128]{1,0:T(1,128)}', space=vmem, size = 0x12000, scoped, tag = 'internal scratch']
  %s0 = inlined_call_operand.hbm [shape: f32[3,4096], index: 0, kind: input, shape index: {}]
  %s1 = inlined_call_operand.vmem [shape: f32[32,3], index: 1, kind: input, shape index: {}]
  %s2 = inlined_call_operand.vmem [shape: f32[32,1], index: 2, kind: input, shape index: {}]
  %s3 = inlined_call_operand.vmem [shape: f32[32,32], index: 3, kind: input, shape index: {}]
  %s4 = inlined_call_operand.vmem [shape: f32[32,1], index: 4, kind: input, shape index: {}]
  %s5 = inlined_call_operand.vmem [shape: f32[32,32], index: 5, kind: input, shape index: {}]
  %s6 = inlined_call_operand.vmem [shape: f32[32,1], index: 6, kind: input, shape index: {}]
  %s7 = inlined_call_operand.vmem [shape: f32[3,32], index: 7, kind: input, shape index: {}]
  %s8 = inlined_call_operand.vmem [shape: f32[3,1], index: 8, kind: input, shape index: {}]
  %s9 = inlined_call_operand.hbm [shape: f32[3,4096], index: 9, kind: output, shape index: {}]
  %s10 = sld [smem:[#allocation0]]
  $region73: #{tpu_custom_call.1} parent=0
    _
  %s12 = ssub.s32 1, %s10
  %s13 = scalar_select 0, %s12, %s10
  $region1: #{tpu_custom_call.1} parent=0
    #allocation2 [shape = 'u8[32768]{0}', space=vmem, size = 0x8000, scoped, tag = 'input window, operand 0']
    #allocation3 [shape = 's32[2]{0}', space=sflag, size = 0x8, scoped, tag = 'scoped memory for tpu_custom_call.1']
    #allocation4 [shape = 's32[2]{0}', space=sflag, size = 0x8, scoped, tag = 'scoped memory for tpu_custom_call.1']
    #allocation5 [shape = 'u8[32768]{0}', space=vmem, size = 0x8000, scoped, tag = 'output window, operand 0']
    %14 = vsyncpa [#allocation3], 0
    %s15 = scalar_lea.sflag [#allocation3], 1
    %16 = vsyncpa %s15, 0
    %17 = vsyncpa [#allocation4], 0
    %s18 = scalar_lea.sflag [#allocation4], 1
    %19 = vsyncpa %s18, 0
    loop: start=0, step=1, limit=6
    $region2: #{tpu_custom_call.1} parent=1 // loop_pre_header
      _
    $region3: #{tpu_custom_call.1} parent=1 // loop_header
      %s21 = sphi 0, %s25
      %p22 = scmp.ge.s32.totalorder %s21, 6
      %s31 = sphi 0, %s33
      %s34 = sphi 0, %s31
      %s35 = sphi 0, %s34
      %s51 = sphi 0, %s35
      %s55 = sphi 0, %s55
      %s57 = sphi 0, %s55
      %s58 = sphi 0, %s57
      %s72 = sphi 0, %s58
      %s76 = sphi 0, %s76
      %s78 = sphi 0, %s76
      %s79 = sphi 0, %s78
      %s93 = sphi 0, %s79
      %s97 = sphi 0, %s97
      %s99 = sphi 0, %s97
      %s100 = sphi 0, %s99
      %s114 = sphi 0, %s100
      %s118 = sphi 0, %s118
      %s120 = sphi 0, %s118
      %s121 = sphi 0, %s120
      %s135 = sphi 0, %s121
      %s139 = sphi 0, %s139
      %s141 = sphi 0, %s139
      %s142 = sphi 0, %s141
      %s156 = sphi 0, %s142
      %s160 = sphi 0, %s160
      %s162 = sphi 0, %s160
      %s163 = sphi 0, %s162
      %s177 = sphi 0, %s163
      %s181 = sphi 0, %s181
      %s183 = sphi 0, %s181
      %s184 = sphi 0, %s183
      %s198 = sphi 0, %s184
      %s202 = sphi 0, %s202
      %s204 = sphi 0, %s202
      %s205 = sphi 0, %s204
      %s219 = sphi 0, %s205
      %s225 = sphi 0, %s227
      %s228 = sphi 0, %s225
      %s229 = sphi 0, %s228
      %s245 = sphi 0, %s229
    $region4: #{tpu_custom_call.1} parent=1 // loop_header_branch
      %24 = sbr.rel (%p22) target = $region8
    $region5: #{tpu_custom_call.1} parent=1 // loop_body
      %s26 = ssub.s32 %s21, 1
      %s27 = ssub.s32 %s21, 2
      %s28 = sadd.s32 %s21, 1
      %s29 = ssub.s32 %s21, %s28
      %p30 = scmp.eq.s32.totalorder %s29, 0
      %s32 = sadd.s32 %s31, 1
      %s33 = scalar_select %p30, %s31, %s32
      %p36 = pneg %p30
      %p37 = scmp.eq.s32.totalorder %s21, 3
      %p38 = por %p36, %p37
      %p39 = scmp.ne.s32.totalorder %s31, %s34
      %p40 = scmp.eq.s32.totalorder %s21, 0
      %p41 = por %p39, %p40
      %p42 = scmp.ne.s32.totalorder %s31, %s34
      %p43 = scmp.eq.s32.totalorder %s26, 3
      %p44 = por %p42, %p43
      %p45 = scmp.ne.s32.totalorder %s34, %s35
      %p46 = scmp.eq.s32.totalorder %s26, 0
      %p47 = por %p45, %p46
      %p48 = scmp.ne.s32.totalorder %s34, %s35
      %p49 = scmp.eq.s32.totalorder %s27, 3
      %p50 = por %p48, %p49
      %p52 = scmp.ne.s32.totalorder %s35, %s51
      %p53 = scmp.eq.s32.totalorder %s27, 0
      %p54 = por %p52, %p53
      %s56 = sadd.s32 %s55, 1
      %p59 = scmp.eq.s32.totalorder %s21, 3
      %p60 = scmp.ne.s32.totalorder %s55, %s57
      %p61 = scmp.eq.s32.totalorder %s21, 0
      %p62 = por %p60, %p61
      %p63 = scmp.ne.s32.totalorder %s55, %s57
      %p64 = scmp.eq.s32.totalorder %s26, 3
      %p65 = por %p63, %p64
      %p66 = scmp.ne.s32.totalorder %s57, %s58
      %p67 = scmp.eq.s32.totalorder %s26, 0
      %p68 = por %p66, %p67
      %p69 = scmp.ne.s32.totalorder %s57, %s58
      %p70 = scmp.eq.s32.totalorder %s27, 3
      %p71 = por %p69, %p70
      %p73 = scmp.ne.s32.totalorder %s58, %s72
      %p74 = scmp.eq.s32.totalorder %s27, 0
      %p75 = por %p73, %p74
      %s77 = sadd.s32 %s76, 1
      %p80 = scmp.eq.s32.totalorder %s21, 3
      %p81 = scmp.ne.s32.totalorder %s76, %s78
      %p82 = scmp.eq.s32.totalorder %s21, 0
      %p83 = por %p81, %p82
      %p84 = scmp.ne.s32.totalorder %s76, %s78
      %p85 = scmp.eq.s32.totalorder %s26, 3
      %p86 = por %p84, %p85
      %p87 = scmp.ne.s32.totalorder %s78, %s79
      %p88 = scmp.eq.s32.totalorder %s26, 0
      %p89 = por %p87, %p88
      %p90 = scmp.ne.s32.totalorder %s78, %s79
      %p91 = scmp.eq.s32.totalorder %s27, 3
      %p92 = por %p90, %p91
      %p94 = scmp.ne.s32.totalorder %s79, %s93
      %p95 = scmp.eq.s32.totalorder %s27, 0
      %p96 = por %p94, %p95
      %s98 = sadd.s32 %s97, 1
      %p101 = scmp.eq.s32.totalorder %s21, 3
      %p102 = scmp.ne.s32.totalorder %s97, %s99
      %p103 = scmp.eq.s32.totalorder %s21, 0
      %p104 = por %p102, %p103
      %p105 = scmp.ne.s32.totalorder %s97, %s99
      %p106 = scmp.eq.s32.totalorder %s26, 3
      %p107 = por %p105, %p106
      %p108 = scmp.ne.s32.totalorder %s99, %s100
      %p109 = scmp.eq.s32.totalorder %s26, 0
      %p110 = por %p108, %p109
      %p111 = scmp.ne.s32.totalorder %s99, %s100
      %p112 = scmp.eq.s32.totalorder %s27, 3
      %p113 = por %p111, %p112
      %p115 = scmp.ne.s32.totalorder %s100, %s114
      %p116 = scmp.eq.s32.totalorder %s27, 0
      %p117 = por %p115, %p116
      %s119 = sadd.s32 %s118, 1
      %p122 = scmp.eq.s32.totalorder %s21, 3
      %p123 = scmp.ne.s32.totalorder %s118, %s120
      %p124 = scmp.eq.s32.totalorder %s21, 0
      %p125 = por %p123, %p124
      %p126 = scmp.ne.s32.totalorder %s118, %s120
      %p127 = scmp.eq.s32.totalorder %s26, 3
      %p128 = por %p126, %p127
      %p129 = scmp.ne.s32.totalorder %s120, %s121
      %p130 = scmp.eq.s32.totalorder %s26, 0
      %p131 = por %p129, %p130
      %p132 = scmp.ne.s32.totalorder %s120, %s121
      %p133 = scmp.eq.s32.totalorder %s27, 3
      %p134 = por %p132, %p133
      %p136 = scmp.ne.s32.totalorder %s121, %s135
      %p137 = scmp.eq.s32.totalorder %s27, 0
      %p138 = por %p136, %p137
      %s140 = sadd.s32 %s139, 1
      %p143 = scmp.eq.s32.totalorder %s21, 3
      %p144 = scmp.ne.s32.totalorder %s139, %s141
      %p145 = scmp.eq.s32.totalorder %s21, 0
      %p146 = por %p144, %p145
      %p147 = scmp.ne.s32.totalorder %s139, %s141
      %p148 = scmp.eq.s32.totalorder %s26, 3
      %p149 = por %p147, %p148
      %p150 = scmp.ne.s32.totalorder %s141, %s142
      %p151 = scmp.eq.s32.totalorder %s26, 0
      %p152 = por %p150, %p151
      %p153 = scmp.ne.s32.totalorder %s141, %s142
      %p154 = scmp.eq.s32.totalorder %s27, 3
      %p155 = por %p153, %p154
      %p157 = scmp.ne.s32.totalorder %s142, %s156
      %p158 = scmp.eq.s32.totalorder %s27, 0
      %p159 = por %p157, %p158
      %s161 = sadd.s32 %s160, 1
      %p164 = scmp.eq.s32.totalorder %s21, 3
      %p165 = scmp.ne.s32.totalorder %s160, %s162
      %p166 = scmp.eq.s32.totalorder %s21, 0
      %p167 = por %p165, %p166
      %p168 = scmp.ne.s32.totalorder %s160, %s162
      %p169 = scmp.eq.s32.totalorder %s26, 3
      %p170 = por %p168, %p169
      %p171 = scmp.ne.s32.totalorder %s162, %s163
      %p172 = scmp.eq.s32.totalorder %s26, 0
      %p173 = por %p171, %p172
      %p174 = scmp.ne.s32.totalorder %s162, %s163
      %p175 = scmp.eq.s32.totalorder %s27, 3
      %p176 = por %p174, %p175
      %p178 = scmp.ne.s32.totalorder %s163, %s177
      %p179 = scmp.eq.s32.totalorder %s27, 0
      %p180 = por %p178, %p179
      %s182 = sadd.s32 %s181, 1
      %p185 = scmp.eq.s32.totalorder %s21, 3
      %p186 = scmp.ne.s32.totalorder %s181, %s183
      %p187 = scmp.eq.s32.totalorder %s21, 0
      %p188 = por %p186, %p187
      %p189 = scmp.ne.s32.totalorder %s181, %s183
      %p190 = scmp.eq.s32.totalorder %s26, 3
      %p191 = por %p189, %p190
      %p192 = scmp.ne.s32.totalorder %s183, %s184
      %p193 = scmp.eq.s32.totalorder %s26, 0
      %p194 = por %p192, %p193
      %p195 = scmp.ne.s32.totalorder %s183, %s184
      %p196 = scmp.eq.s32.totalorder %s27, 3
      %p197 = por %p195, %p196
      %p199 = scmp.ne.s32.totalorder %s184, %s198
      %p200 = scmp.eq.s32.totalorder %s27, 0
      %p201 = por %p199, %p200
      %s203 = sadd.s32 %s202, 1
      %p206 = scmp.eq.s32.totalorder %s21, 3
      %p207 = scmp.ne.s32.totalorder %s202, %s204
      %p208 = scmp.eq.s32.totalorder %s21, 0
      %p209 = por %p207, %p208
      %p210 = scmp.ne.s32.totalorder %s202, %s204
      %p211 = scmp.eq.s32.totalorder %s26, 3
      %p212 = por %p210, %p211
      %p213 = scmp.ne.s32.totalorder %s204, %s205
      %p214 = scmp.eq.s32.totalorder %s26, 0
      %p215 = por %p213, %p214
      %p216 = scmp.ne.s32.totalorder %s204, %s205
      %p217 = scmp.eq.s32.totalorder %s27, 3
      %p218 = por %p216, %p217
      %p220 = scmp.ne.s32.totalorder %s205, %s219
      %p221 = scmp.eq.s32.totalorder %s27, 0
      %p222 = por %p220, %p221
      %s223 = ssub.s32 %s21, %s28
      %p224 = scmp.eq.s32.totalorder %s223, 0
      %s226 = sadd.s32 %s225, 1
      %s227 = scalar_select %p224, %s225, %s226
      %p230 = pneg %p224
      %p231 = scmp.eq.s32.totalorder %s21, 3
      %p232 = por %p230, %p231
      %p233 = scmp.ne.s32.totalorder %s225, %s228
      %p234 = scmp.eq.s32.totalorder %s21, 0
      %p235 = por %p233, %p234
      %p236 = scmp.ne.s32.totalorder %s225, %s228
      %p237 = scmp.eq.s32.totalorder %s26, 3
      %p238 = por %p236, %p237
      %p239 = scmp.ne.s32.totalorder %s228, %s229
      %p240 = scmp.eq.s32.totalorder %s26, 0
      %p241 = por %p239, %p240
      %p242 = scmp.ne.s32.totalorder %s228, %s229
      %p243 = scmp.eq.s32.totalorder %s27, 3
      %p244 = por %p242, %p243
      %p246 = scmp.ne.s32.totalorder %s229, %s245
      %p247 = scmp.eq.s32.totalorder %s27, 0
      %p248 = por %p246, %p247
      %p249 = scmp.le.s32.totalorder 1, %s21
      %p250 = scmp.lt.s32.totalorder %s21, 5
      %p251 = pnand %p249, %p250
      %p252 = pneg %p251
      // Predicated region
      $region9: #{tpu_custom_call.1} parent=5 // pred_check
        _
      $region10: #{tpu_custom_call.1} parent=5 // pred_check_branch
        %254 = sbr.rel (%p251) target = $region12
      $region11: #{tpu_custom_call.1} parent=5 // pred_region
        %s255 = ssub.s32 %s21, 1
        // Predicated region
        $region13: #{tpu_custom_call.1} parent=11 // pred_check
          %p256 = pneg %p68
        $region14: #{tpu_custom_call.1} parent=11 // pred_check_branch
          %258 = sbr.rel (%p256) target = $region16
        $region15: #{tpu_custom_call.1} parent=11 // pred_region
          _
        $region16: #{tpu_custom_call.1} parent=11 // pred_fallthru
          _
        // Predicated region
        $region17: #{tpu_custom_call.1} parent=11 // pred_check
          %p259 = pneg %p89
        $region18: #{tpu_custom_call.1} parent=11 // pred_check_branch
          %261 = sbr.rel (%p259) target = $region20
        $region19: #{tpu_custom_call.1} parent=11 // pred_region
          _
        $region20: #{tpu_custom_call.1} parent=11 // pred_fallthru
          _
        // Predicated region
        $region21: #{tpu_custom_call.1} parent=11 // pred_check
          %p262 = pneg %p110
        $region22: #{tpu_custom_call.1} parent=11 // pred_check_branch
          %264 = sbr.rel (%p262) target = $region24
        $region23: #{tpu_custom_call.1} parent=11 // pred_region
          _
        $region24: #{tpu_custom_call.1} parent=11 // pred_fallthru
          _
        // Predicated region
        $region25: #{tpu_custom_call.1} parent=11 // pred_check
          %p265 = pneg %p131
        $region26: #{tpu_custom_call.1} parent=11 // pred_check_branch
          %267 = sbr.rel (%p265) target = $region28
        $region27: #{tpu_custom_call.1} parent=11 // pred_region
          _
        $region28: #{tpu_custom_call.1} parent=11 // pred_fallthru
          _
        // Predicated region
        $region29: #{tpu_custom_call.1} parent=11 // pred_check
          %p268 = pneg %p152
        $region30: #{tpu_custom_call.1} parent=11 // pred_check_branch
          %270 = sbr.rel (%p268) target = $region32
        $region31: #{tpu_custom_call.1} parent=11 // pred_region
          _
        $region32: #{tpu_custom_call.1} parent=11 // pred_fallthru
          _
        // Predicated region
        $region33: #{tpu_custom_call.1} parent=11 // pred_check
          %p271 = pneg %p173
        $region34: #{tpu_custom_call.1} parent=11 // pred_check_branch
          %273 = sbr.rel (%p271) target = $region36
        $region35: #{tpu_custom_call.1} parent=11 // pred_region
          _
        $region36: #{tpu_custom_call.1} parent=11 // pred_fallthru
          _
        // Predicated region
        $region37: #{tpu_custom_call.1} parent=11 // pred_check
          %p274 = pneg %p194
        $region38: #{tpu_custom_call.1} parent=11 // pred_check_branch
          %276 = sbr.rel (%p274) target = $region40
        $region39: #{tpu_custom_call.1} parent=11 // pred_region
          _
        $region40: #{tpu_custom_call.1} parent=11 // pred_fallthru
          _
        // Predicated region
        $region41: #{tpu_custom_call.1} parent=11 // pred_check
          %p277 = pneg %p215
        $region42: #{tpu_custom_call.1} parent=11 // pred_check_branch
          %279 = sbr.rel (%p277) target = $region44
        $region43: #{tpu_custom_call.1} parent=11 // pred_region
          _
        $region44: #{tpu_custom_call.1} parent=11 // pred_fallthru
          _
      $region12: #{tpu_custom_call.1} parent=5 // pred_fallthru
        _
      %p280 = scmp.lt.s32.totalorder %s21, 4
      // Predicated region
      $region45: #{tpu_custom_call.1} parent=5 // pred_check
        %p281 = pneg %p280
      $region46: #{tpu_custom_call.1} parent=5 // pred_check_branch
        %283 = sbr.rel (%p281) target = $region48
      $region47: #{tpu_custom_call.1} parent=5 // pred_region
        // Predicated region
        $region49: #{tpu_custom_call.1} parent=47 // pred_check
          %p284 = pneg %p41
        $region50: #{tpu_custom_call.1} parent=47 // pred_check_branch
          %286 = sbr.rel (%p284) target = $region52
        $region51: #{tpu_custom_call.1} parent=47 // pred_region
          %s287 = sand.u32 %s31, 1
          %s288 = scalar_lea.sflag [#allocation3], %s287
          %s289 = sand.u32 %s31, 1
          %s290 = smul.addr %s289, 32
          %s291 = scalar_lea.vmem [#allocation2], %s290
          %s292 = smul.u32 8, %s21
          %s294 = ssub.s32 512, 512
          %295 = vsyncadd %s288, %s294
          %s296 = smul.addr %s292, 64
          %s297 = scalar_lea.hbm %s0, %s296
          %s299 = sshll.u32 %s291, 4
          %s300 = int_to_ptr.vmem [resolvable:$true] %s299
          %302 = dma.hbm_to_vmem [thread:$0]  %s297, 512, %s300, %s288
        $region52: #{tpu_custom_call.1} parent=47 // pred_fallthru
          _
      $region48: #{tpu_custom_call.1} parent=5 // pred_fallthru
        _
      %p303 = scmp.le.s32.totalorder 1, %s21
      %p304 = scmp.lt.s32.totalorder %s21, 5
      %p305 = pnand %p303, %p304
      %p306 = pneg %p305
      // Predicated region
      $region53: #{tpu_custom_call.1} parent=5 // pred_check
        _
      $region54: #{tpu_custom_call.1} parent=5 // pred_check_branch
        %308 = sbr.rel (%p305) target = $region56
      $region55: #{tpu_custom_call.1} parent=5 // pred_region
        %s309 = ssub.s32 %s21, 1
        %s310 = sand.u32 %s34, 1
        %s311 = scalar_lea.sflag [#allocation3], %s310
        %s312 = sand.u32 %s34, 1
        %s313 = smul.addr %s312, 32
        %s314 = scalar_lea.vmem [#allocation2], %s313
        // Predicated region
        $region57: #{tpu_custom_call.1} parent=55 // pred_check
          %p315 = pneg %p47
        $region58: #{tpu_custom_call.1} parent=55 // pred_check_branch
          %317 = sbr.rel (%p315) target = $region60
        $region59: #{tpu_custom_call.1} parent=55 // pred_region
          %318 = dma.done %s311, 512
        $region60: #{tpu_custom_call.1} parent=55 // pred_fallthru
          _
        %s319 = sand.u32 %s34, 1
        %s320 = scalar_lea.sflag [#allocation3], %s319
        %s321 = sand.u32 %s34, 1
        %s322 = smul.addr %s321, 32
        %s323 = scalar_lea.vmem [#allocation2], %s322
        %p324 = pneg %p47
        %p325 = pneg %p44
        %p326 = pneg %p68
        %p327 = pneg %p65
        %p328 = pneg %p89
        %p329 = pneg %p86
        %p330 = pneg %p110
        %p331 = pneg %p107
        %p332 = pneg %p131
        %p333 = pneg %p128
        %p334 = pneg %p152
        %p335 = pneg %p149
        %p336 = pneg %p173
        %p337 = pneg %p170
        %p338 = pneg %p194
        %p339 = pneg %p191
        %p340 = pneg %p215
        %p341 = pneg %p212
        %p342 = pneg %p241
        %p343 = pneg %p238
        %s344 = sand.u32 %s228, 1
        %s345 = scalar_lea.sflag [#allocation4], %s344
        %s346 = sand.u32 %s228, 1
        %s347 = smul.addr %s346, 32
        %s348 = scalar_lea.vmem [#allocation5], %s347
        %s349 = smul.u32 8, %s26
        %s350 = smul.u32 8, %s26
        %v351 = vld [vmem:[%s314] sm:$0x77]
        %v352 = vld [vmem:[%s314 + $0x8] sm:$0x77]
        %v353 = vld [vmem:[%s314 + $0x10] sm:$0x77]
        %v354 = vld [vmem:[%s314 + $0x18] sm:$0x77]
        %v355 = vld [vmem:[%s1] sm:$0xff]
        %v356 = vld [vmem:[%s1 + $0x8] sm:$0xff]
        %v357 = vld [vmem:[%s1 + $0x10] sm:$0xff]
        %v358 = vld [vmem:[%s1 + $0x18] sm:$0xff]
        %v359 = vld [vmem:[%s2] sm:$0xff]
        %v360 = vld [vmem:[%s2 + $0x8] sm:$0xff]
        %v361 = vld [vmem:[%s2 + $0x10] sm:$0xff]
        %v362 = vld [vmem:[%s2 + $0x18] sm:$0xff]
        %364 = vset.pattern.permute.xlu0 0
        %365 = vperm.xlu0 %364, %v359
        %v366 = vpop.permute.xlu0 %365
        %369 = vset.pattern.permute.xlu0 0
        %370 = vperm.xlu0 %369, %v360
        %v371 = vpop.permute.xlu0 %370
        %374 = vset.pattern.permute.xlu0 0
        %375 = vperm.xlu0 %374, %v361
        %v376 = vpop.permute.xlu0 %375
        %379 = vset.pattern.permute.xlu0 0
        %380 = vperm.xlu0 %379, %v362
        %v381 = vpop.permute.xlu0 %380
        %v387 = vcombine.high %v351, %v351
        %v388 = vcombine.high %v352, %v352
        %v389 = vcombine.high %v353, %v353
        %v390 = vcombine.high %v354, %v354
        %vm391 = vcmask 23552
        %v393 = vsel %vm391, %v355, 0
        %v396 = vsel %vm391, %v356, 0
        %v399 = vsel %vm391, %v357, 0
        %v402 = vsel %vm391, %v358, 0
        %vm404 = vcmask 1042432
        %v405 = vsel %vm404, %v351, 0
        %v407 = vsel %vm404, %v387, 0
        %v409 = vsel %vm404, %v352, 0
        %v411 = vsel %vm404, %v388, 0
        %v413 = vsel %vm404, %v353, 0
        %v415 = vsel %vm404, %v389, 0
        %v417 = vsel %vm404, %v354, 0
        %v419 = vsel %vm404, %v390, 0
        %421 = vmatprep.subr.mxu0 0.0
        %422 = vmatpush1.msra.mxu0 0.0
        %423 = vmatprep.subr.mxu0 0.0
        %424 = vmatpush1.msra.mxu0 0.0
        %425 = vmatprep.subr.mxu0 0.0
        %426 = vmatpush1.msra.mxu0 0.0
        %427 = vmatprep.subr.mxu0 0.0
        %428 = vmatpush1.msra.mxu0 0.0
        %429 = vmatprep.subr.mxu0 0.0
        %430 = vmatpush1.msra.mxu0 0.0
        %431 = vmatprep.subr.mxu0 0.0
        %432 = vmatpush1.msra.mxu0 0.0
        %433 = vmatprep.subr.mxu0 0.0
        %434 = vmatpush1.msra.mxu0 0.0
        %435 = vmatprep.subr.mxu0 0.0
        %436 = vmatpush1.msra.mxu0 0.0
        %437 = vmatprep.subr.mxu0 0.0
        %438 = vmatpush1.msra.mxu0 0.0
        %439 = vmatprep.subr.mxu0 0.0
        %440 = vmatpush1.msra.mxu0 0.0
        %441 = vmatprep.subr.mxu0 0.0
        %442 = vmatpush1.msra.mxu0 0.0
        %443 = vmatprep.subr.mxu0 0.0
        %444 = vmatpush1.msra.mxu0 0.0
        %445 = vmatprep.subr.mxu0 0.0
        %446 = vmatpush1.msra.mxu0 0.0
        %447 = vmatprep.subr.mxu0 0.0
        %448 = vmatpush1.msra.mxu0 0.0
        %449 = vmatprep.subr.mxu0 0.0
        %450 = vmatpush1.msra.mxu0 0.0
        %451 = vmatprep.subr.mxu0 %v407
        %452 = vmatpush1.msra.mxu0 %v405
        %453 = vmatprep.subr.mxu0 0.0
        %454 = vmatpush2.msra.mxu0 0.0
        %455 = vmatprep.subr.mxu0 0.0
        %456 = vmatpush2.msra.mxu0 0.0
        %457 = vmatprep.subr.mxu0 0.0
        %458 = vmatpush2.msra.mxu0 0.0
        %459 = vmatprep.subr.mxu0 0.0
        %460 = vmatpush2.msra.mxu0 0.0
        %461 = vmatprep.subr.mxu0 0.0
        %462 = vmatpush2.msra.mxu0 0.0
        %463 = vmatprep.subr.mxu0 0.0
        %464 = vmatpush2.msra.mxu0 0.0
        %465 = vmatprep.subr.mxu0 0.0
        %466 = vmatpush2.msra.mxu0 0.0
        %467 = vmatprep.subr.mxu0 0.0
        %468 = vmatpush2.msra.mxu0 0.0
        %469 = vmatprep.subr.mxu0 0.0
        %470 = vmatpush2.msra.mxu0 0.0
        %471 = vmatprep.subr.mxu0 0.0
        %472 = vmatpush2.msra.mxu0 0.0
        %473 = vmatprep.subr.mxu0 0.0
        %474 = vmatpush2.msra.mxu0 0.0
        %475 = vmatprep.subr.mxu0 0.0
        %476 = vmatpush2.msra.mxu0 0.0
        %477 = vmatprep.subr.mxu0 0.0
        %478 = vmatpush2.msra.mxu0 0.0
        %479 = vmatprep.subr.mxu0 0.0
        %480 = vmatpush2.msra.mxu0 0.0
        %481 = vmatprep.subr.mxu0 0.0
        %482 = vmatpush2.msra.mxu0 0.0
        %483 = vmatprep.subr.mxu0 0.0
        %484 = vmatpush2.msra.mxu0 0.0
        %485 = vmatprep.mubr.f32.mxu0 0.0
        %486 = vmatmul.mubr.f32.gmra.mxu0 %v393
        %v487 = vpop.f32.mrf.mxu0
        %v488 = vadd.f32 %v366, %v487
        %v489 = vpop.f32.mrf.mxu0
        %v490 = vadd.f32 %v366, %v489
        %491 = vmatprep.mubr.f32.mxu0 0.0
        %492 = vmatmul.mubr.f32.gmra.mxu0 %v396
        %v493 = vpop.f32.mrf.mxu0
        %v494 = vadd.f32 %v371, %v493
        %v495 = vpop.f32.mrf.mxu0
        %v496 = vadd.f32 %v371, %v495
        %497 = vmatprep.mubr.f32.mxu0 0.0
        %498 = vmatmul.mubr.f32.gmra.mxu0 %v399
        %v499 = vpop.f32.mrf.mxu0
        %v500 = vadd.f32 %v376, %v499
        %v501 = vpop.f32.mrf.mxu0
        %v502 = vadd.f32 %v376, %v501
        %503 = vmatprep.mubr.f32.mxu0 0.0
        %504 = vmatmul.mubr.f32.gmra.mxu0 %v402
        %v505 = vpop.f32.mrf.mxu0
        %v506 = vadd.f32 %v381, %v505
        %v507 = vpop.f32.mrf.mxu0
        %v508 = vadd.f32 %v381, %v507
        %509 = vdwg.mxu0
        %510 = vmatprep.subr.mxu0 0.0
        %511 = vmatpush1.msra.mxu0 0.0
        %512 = vmatprep.subr.mxu0 0.0
        %513 = vmatpush1.msra.mxu0 0.0
        %514 = vmatprep.subr.mxu0 0.0
        %515 = vmatpush1.msra.mxu0 0.0
        %516 = vmatprep.subr.mxu0 0.0
        %517 = vmatpush1.msra.mxu0 0.0
        %518 = vmatprep.subr.mxu0 0.0
        %519 = vmatpush1.msra.mxu0 0.0
        %520 = vmatprep.subr.mxu0 0.0
        %521 = vmatpush1.msra.mxu0 0.0
        %522 = vmatprep.subr.mxu0 0.0
        %523 = vmatpush1.msra.mxu0 0.0
        %524 = vmatprep.subr.mxu0 0.0
        %525 = vmatpush1.msra.mxu0 0.0
        %526 = vmatprep.subr.mxu0 0.0
        %527 = vmatpush1.msra.mxu0 0.0
        %528 = vmatprep.subr.mxu0 0.0
        %529 = vmatpush1.msra.mxu0 0.0
        %530 = vmatprep.subr.mxu0 0.0
        %531 = vmatpush1.msra.mxu0 0.0
        %532 = vmatprep.subr.mxu0 0.0
        %533 = vmatpush1.msra.mxu0 0.0
        %534 = vmatprep.subr.mxu0 0.0
        %535 = vmatpush1.msra.mxu0 0.0
        %536 = vmatprep.subr.mxu0 0.0
        %537 = vmatpush1.msra.mxu0 0.0
        %538 = vmatprep.subr.mxu0 0.0
        %539 = vmatpush1.msra.mxu0 0.0
        %540 = vmatprep.subr.mxu0 %v411
        %541 = vmatpush1.msra.mxu0 %v409
        %542 = vmatprep.subr.mxu0 0.0
        %543 = vmatpush2.msra.mxu0 0.0
        %544 = vmatprep.subr.mxu0 0.0
        %545 = vmatpush2.msra.mxu0 0.0
        %546 = vmatprep.subr.mxu0 0.0
        %547 = vmatpush2.msra.mxu0 0.0
        %548 = vmatprep.subr.mxu0 0.0
        %549 = vmatpush2.msra.mxu0 0.0
        %550 = vmatprep.subr.mxu0 0.0
        %551 = vmatpush2.msra.mxu0 0.0
        %552 = vmatprep.subr.mxu0 0.0
        %553 = vmatpush2.msra.mxu0 0.0
        %554 = vmatprep.subr.mxu0 0.0
        %555 = vmatpush2.msra.mxu0 0.0
        %556 = vmatprep.subr.mxu0 0.0
        %557 = vmatpush2.msra.mxu0 0.0
        %558 = vmatprep.subr.mxu0 0.0
        %559 = vmatpush2.msra.mxu0 0.0
        %560 = vmatprep.subr.mxu0 0.0
        %561 = vmatpush2.msra.mxu0 0.0
        %562 = vmatprep.subr.mxu0 0.0
        %563 = vmatpush2.msra.mxu0 0.0
        %564 = vmatprep.subr.mxu0 0.0
        %565 = vmatpush2.msra.mxu0 0.0
        %566 = vmatprep.subr.mxu0 0.0
        %567 = vmatpush2.msra.mxu0 0.0
        %568 = vmatprep.subr.mxu0 0.0
        %569 = vmatpush2.msra.mxu0 0.0
        %570 = vmatprep.subr.mxu0 0.0
        %571 = vmatpush2.msra.mxu0 0.0
        %572 = vmatprep.subr.mxu0 0.0
        %573 = vmatpush2.msra.mxu0 0.0
        %574 = vmatprep.mubr.f32.mxu0 0.0
        %575 = vmatmul.mubr.f32.gmra.mxu0 %v393
        %v576 = vpop.f32.mrf.mxu0
        %v577 = vadd.f32 %v366, %v576
        %v578 = vpop.f32.mrf.mxu0
        %v579 = vadd.f32 %v366, %v578
        %580 = vmatprep.mubr.f32.mxu0 0.0
        %581 = vmatmul.mubr.f32.gmra.mxu0 %v396
        %v582 = vpop.f32.mrf.mxu0
        %v583 = vadd.f32 %v371, %v582
        %v584 = vpop.f32.mrf.mxu0
        %v585 = vadd.f32 %v371, %v584
        %586 = vmatprep.mubr.f32.mxu0 0.0
        %587 = vmatmul.mubr.f32.gmra.mxu0 %v399
        %v588 = vpop.f32.mrf.mxu0
        %v589 = vadd.f32 %v376, %v588
        %v590 = vpop.f32.mrf.mxu0
        %v591 = vadd.f32 %v376, %v590
        %592 = vmatprep.mubr.f32.mxu0 0.0
        %593 = vmatmul.mubr.f32.gmra.mxu0 %v402
        %v594 = vpop.f32.mrf.mxu0
        %v595 = vadd.f32 %v381, %v594
        %v596 = vpop.f32.mrf.mxu0
        %v597 = vadd.f32 %v381, %v596
        %598 = vdwg.mxu0
        %599 = vmatprep.subr.mxu0 0.0
        %600 = vmatpush1.msra.mxu0 0.0
        %601 = vmatprep.subr.mxu0 0.0
        %602 = vmatpush1.msra.mxu0 0.0
        %603 = vmatprep.subr.mxu0 0.0
        %604 = vmatpush1.msra.mxu0 0.0
        %605 = vmatprep.subr.mxu0 0.0
        %606 = vmatpush1.msra.mxu0 0.0
        %607 = vmatprep.subr.mxu0 0.0
        %608 = vmatpush1.msra.mxu0 0.0
        %609 = vmatprep.subr.mxu0 0.0
        %610 = vmatpush1.msra.mxu0 0.0
        %611 = vmatprep.subr.mxu0 0.0
        %612 = vmatpush1.msra.mxu0 0.0
        %613 = vmatprep.subr.mxu0 0.0
        %614 = vmatpush1.msra.mxu0 0.0
        %615 = vmatprep.subr.mxu0 0.0
        %616 = vmatpush1.msra.mxu0 0.0
        %617 = vmatprep.subr.mxu0 0.0
        %618 = vmatpush1.msra.mxu0 0.0
        %619 = vmatprep.subr.mxu0 0.0
        %620 = vmatpush1.msra.mxu0 0.0
        %621 = vmatprep.subr.mxu0 0.0
        %622 = vmatpush1.msra.mxu0 0.0
        %623 = vmatprep.subr.mxu0 0.0
        %624 = vmatpush1.msra.mxu0 0.0
        %625 = vmatprep.subr.mxu0 0.0
        %626 = vmatpush1.msra.mxu0 0.0
        %627 = vmatprep.subr.mxu0 0.0
        %628 = vmatpush1.msra.mxu0 0.0
        %629 = vmatprep.subr.mxu0 %v415
        %630 = vmatpush1.msra.mxu0 %v413
        %631 = vmatprep.subr.mxu0 0.0
        %632 = vmatpush2.msra.mxu0 0.0
        %633 = vmatprep.subr.mxu0 0.0
        %634 = vmatpush2.msra.mxu0 0.0
        %635 = vmatprep.subr.mxu0 0.0
        %636 = vmatpush2.msra.mxu0 0.0
        %637 = vmatprep.subr.mxu0 0.0
        %638 = vmatpush2.msra.mxu0 0.0
        %639 = vmatprep.subr.mxu0 0.0
        %640 = vmatpush2.msra.mxu0 0.0
        %641 = vmatprep.subr.mxu0 0.0
        %642 = vmatpush2.msra.mxu0 0.0
        %643 = vmatprep.subr.mxu0 0.0
        %644 = vmatpush2.msra.mxu0 0.0
        %645 = vmatprep.subr.mxu0 0.0
        %646 = vmatpush2.msra.mxu0 0.0
        %647 = vmatprep.subr.mxu0 0.0
        %648 = vmatpush2.msra.mxu0 0.0
        %649 = vmatprep.subr.mxu0 0.0
        %650 = vmatpush2.msra.mxu0 0.0
        %651 = vmatprep.subr.mxu0 0.0
        %652 = vmatpush2.msra.mxu0 0.0
        %653 = vmatprep.subr.mxu0 0.0
        %654 = vmatpush2.msra.mxu0 0.0
        %655 = vmatprep.subr.mxu0 0.0
        %656 = vmatpush2.msra.mxu0 0.0
        %657 = vmatprep.subr.mxu0 0.0
        %658 = vmatpush2.msra.mxu0 0.0
        %659 = vmatprep.subr.mxu0 0.0
        %660 = vmatpush2.msra.mxu0 0.0
        %661 = vmatprep.subr.mxu0 0.0
        %662 = vmatpush2.msra.mxu0 0.0
        %663 = vmatprep.mubr.f32.mxu0 0.0
        %664 = vmatmul.mubr.f32.gmra.mxu0 %v393
        %v665 = vpop.f32.mrf.mxu0
        %v666 = vadd.f32 %v366, %v665
        %v667 = vpop.f32.mrf.mxu0
        %v668 = vadd.f32 %v366, %v667
        %669 = vmatprep.mubr.f32.mxu0 0.0
        %670 = vmatmul.mubr.f32.gmra.mxu0 %v396
        %v671 = vpop.f32.mrf.mxu0
        %v672 = vadd.f32 %v371, %v671
        %v673 = vpop.f32.mrf.mxu0
        %v674 = vadd.f32 %v371, %v673
        %675 = vmatprep.mubr.f32.mxu0 0.0
        %676 = vmatmul.mubr.f32.gmra.mxu0 %v399
        %v677 = vpop.f32.mrf.mxu0
        %v678 = vadd.f32 %v376, %v677
        %v679 = vpop.f32.mrf.mxu0
        %v680 = vadd.f32 %v376, %v679
        %681 = vmatprep.mubr.f32.mxu0 0.0
        %682 = vmatmul.mubr.f32.gmra.mxu0 %v402
        %v683 = vpop.f32.mrf.mxu0
        %v684 = vadd.f32 %v381, %v683
        %v685 = vpop.f32.mrf.mxu0
        %v686 = vadd.f32 %v381, %v685
        %687 = vdwg.mxu0
        %688 = vmatprep.subr.mxu0 0.0
        %689 = vmatpush1.msra.mxu0 0.0
        %690 = vmatprep.subr.mxu0 0.0
        %691 = vmatpush1.msra.mxu0 0.0
        %692 = vmatprep.subr.mxu0 0.0
        %693 = vmatpush1.msra.mxu0 0.0
        %694 = vmatprep.subr.mxu0 0.0
        %695 = vmatpush1.msra.mxu0 0.0
        %696 = vmatprep.subr.mxu0 0.0
        %697 = vmatpush1.msra.mxu0 0.0
        %698 = vmatprep.subr.mxu0 0.0
        %699 = vmatpush1.msra.mxu0 0.0
        %700 = vmatprep.subr.mxu0 0.0
        %701 = vmatpush1.msra.mxu0 0.0
        %702 = vmatprep.subr.mxu0 0.0
        %703 = vmatpush1.msra.mxu0 0.0
        %704 = vmatprep.subr.mxu0 0.0
        %705 = vmatpush1.msra.mxu0 0.0
        %706 = vmatprep.subr.mxu0 0.0
        %707 = vmatpush1.msra.mxu0 0.0
        %708 = vmatprep.subr.mxu0 0.0
        %709 = vmatpush1.msra.mxu0 0.0
        %710 = vmatprep.subr.mxu0 0.0
        %711 = vmatpush1.msra.mxu0 0.0
        %712 = vmatprep.subr.mxu0 0.0
        %713 = vmatpush1.msra.mxu0 0.0
        %714 = vmatprep.subr.mxu0 0.0
        %715 = vmatpush1.msra.mxu0 0.0
        %716 = vmatprep.subr.mxu0 0.0
        %717 = vmatpush1.msra.mxu0 0.0
        %718 = vmatprep.subr.mxu0 %v419
        %719 = vmatpush1.msra.mxu0 %v417
        %720 = vmatprep.subr.mxu0 0.0
        %721 = vmatpush2.msra.mxu0 0.0
        %722 = vmatprep.subr.mxu0 0.0
        %723 = vmatpush2.msra.mxu0 0.0
        %724 = vmatprep.subr.mxu0 0.0
        %725 = vmatpush2.msra.mxu0 0.0
        %726 = vmatprep.subr.mxu0 0.0
        %727 = vmatpush2.msra.mxu0 0.0
        %728 = vmatprep.subr.mxu0 0.0
        %729 = vmatpush2.msra.mxu0 0.0
        %730 = vmatprep.subr.mxu0 0.0
        %731 = vmatpush2.msra.mxu0 0.0
        %732 = vmatprep.subr.mxu0 0.0
        %733 = vmatpush2.msra.mxu0 0.0
        %734 = vmatprep.subr.mxu0 0.0
        %735 = vmatpush2.msra.mxu0 0.0
        %736 = vmatprep.subr.mxu0 0.0
        %737 = vmatpush2.msra.mxu0 0.0
        %738 = vmatprep.subr.mxu0 0.0
        %739 = vmatpush2.msra.mxu0 0.0
        %740 = vmatprep.subr.mxu0 0.0
        %741 = vmatpush2.msra.mxu0 0.0
        %742 = vmatprep.subr.mxu0 0.0
        %743 = vmatpush2.msra.mxu0 0.0
        %744 = vmatprep.subr.mxu0 0.0
        %745 = vmatpush2.msra.mxu0 0.0
        %746 = vmatprep.subr.mxu0 0.0
        %747 = vmatpush2.msra.mxu0 0.0
        %748 = vmatprep.subr.mxu0 0.0
        %749 = vmatpush2.msra.mxu0 0.0
        %750 = vmatprep.subr.mxu0 0.0
        %751 = vmatpush2.msra.mxu0 0.0
        %752 = vmatprep.mubr.f32.mxu0 0.0
        %753 = vmatmul.mubr.f32.gmra.mxu0 %v393
        %v754 = vpop.f32.mrf.mxu0
        %v755 = vadd.f32 %v366, %v754
        %v756 = vpop.f32.mrf.mxu0
        %v757 = vadd.f32 %v366, %v756
        %758 = vmatprep.mubr.f32.mxu0 0.0
        %759 = vmatmul.mubr.f32.gmra.mxu0 %v396
        %v760 = vpop.f32.mrf.mxu0
        %v761 = vadd.f32 %v371, %v760
        %v762 = vpop.f32.mrf.mxu0
        %v763 = vadd.f32 %v371, %v762
        %764 = vmatprep.mubr.f32.mxu0 0.0
        %765 = vmatmul.mubr.f32.gmra.mxu0 %v399
        %v766 = vpop.f32.mrf.mxu0
        %v767 = vadd.f32 %v376, %v766
        %v768 = vpop.f32.mrf.mxu0
        %v769 = vadd.f32 %v376, %v768
        %770 = vmatprep.mubr.f32.mxu0 0.0
        %771 = vmatmul.mubr.f32.gmra.mxu0 %v402
        %v772 = vpop.f32.mrf.mxu0
        %v773 = vadd.f32 %v381, %v772
        %v774 = vpop.f32.mrf.mxu0
        %v775 = vadd.f32 %v381, %v774
        %776 = vdwg.mxu0
        %v777 = vld [vmem:[%s3] sm:$0xff]
        %v778 = vld [vmem:[%s3 + $0x8] sm:$0xff]
        %v779 = vld [vmem:[%s3 + $0x10] sm:$0xff]
        %v780 = vld [vmem:[%s3 + $0x18] sm:$0xff]
        %v781 = vld [vmem:[%s4] sm:$0xff]
        %v782 = vld [vmem:[%s4 + $0x8] sm:$0xff]
        %v783 = vld [vmem:[%s4 + $0x10] sm:$0xff]
        %v784 = vld [vmem:[%s4 + $0x18] sm:$0xff]
        %786 = vset.pattern.permute.xlu0 0
        %787 = vperm.xlu0 %786, %v781
        %v788 = vpop.permute.xlu0 %787
        %791 = vset.pattern.permute.xlu0 0
        %792 = vperm.xlu0 %791, %v782
        %v793 = vpop.permute.xlu0 %792
        %796 = vset.pattern.permute.xlu0 0
        %797 = vperm.xlu0 %796, %v783
        %v798 = vpop.permute.xlu0 %797
        %801 = vset.pattern.permute.xlu0 0
        %802 = vperm.xlu0 %801, %v784
        %v803 = vpop.permute.xlu0 %802
        %vm805 = vcmask 261120
        %v807 = vsel %vm805, %v777, 0
        %v810 = vsel %vm805, %v778, 0
        %v813 = vsel %vm805, %v779, 0
        %v816 = vsel %vm805, %v780, 0
        %818 = vmatprep.subr.mxu0 0.0
        %819 = vmatpush1.msra.mxu0 0.0
        %820 = vmatprep.subr.mxu0 0.0
        %821 = vmatpush1.msra.mxu0 0.0
        %822 = vmatprep.subr.mxu0 0.0
        %823 = vmatpush1.msra.mxu0 0.0
        %824 = vmatprep.subr.mxu0 0.0
        %825 = vmatpush1.msra.mxu0 0.0
        %826 = vmatprep.subr.mxu0 0.0
        %827 = vmatpush1.msra.mxu0 0.0
        %828 = vmatprep.subr.mxu0 0.0
        %829 = vmatpush1.msra.mxu0 0.0
        %830 = vmatprep.subr.mxu0 0.0
        %831 = vmatpush1.msra.mxu0 0.0
        %832 = vmatprep.subr.mxu0 0.0
        %833 = vmatpush1.msra.mxu0 0.0
        %834 = vmatprep.subr.mxu0 0.0
        %835 = vmatpush1.msra.mxu0 0.0
        %836 = vmatprep.subr.mxu0 0.0
        %837 = vmatpush1.msra.mxu0 0.0
        %838 = vmatprep.subr.mxu0 0.0
        %839 = vmatpush1.msra.mxu0 0.0
        %840 = vmatprep.subr.mxu0 0.0
        %841 = vmatpush1.msra.mxu0 0.0
        %842 = vmatprep.subr.mxu0 %v508
        %843 = vmatpush1.msra.mxu0 %v506
        %844 = vmatprep.subr.mxu0 %v502
        %845 = vmatpush1.msra.mxu0 %v500
        %846 = vmatprep.subr.mxu0 %v496
        %847 = vmatpush1.msra.mxu0 %v494
        %848 = vmatprep.subr.mxu0 %v490
        %849 = vmatpush1.msra.mxu0 %v488
        %850 = vmatprep.subr.mxu0 0.0
        %851 = vmatpush2.msra.mxu0 0.0
        %852 = vmatprep.subr.mxu0 0.0
        %853 = vmatpush2.msra.mxu0 0.0
        %854 = vmatprep.subr.mxu0 0.0
        %855 = vmatpush2.msra.mxu0 0.0
        %856 = vmatprep.subr.mxu0 0.0
        %857 = vmatpush2.msra.mxu0 0.0
        %858 = vmatprep.subr.mxu0 0.0
        %859 = vmatpush2.msra.mxu0 0.0
        %860 = vmatprep.subr.mxu0 0.0
        %861 = vmatpush2.msra.mxu0 0.0
        %862 = vmatprep.subr.mxu0 0.0
        %863 = vmatpush2.msra.mxu0 0.0
        %864 = vmatprep.subr.mxu0 0.0
        %865 = vmatpush2.msra.mxu0 0.0
        %866 = vmatprep.subr.mxu0 0.0
        %867 = vmatpush2.msra.mxu0 0.0
        %868 = vmatprep.subr.mxu0 0.0
        %869 = vmatpush2.msra.mxu0 0.0
        %870 = vmatprep.subr.mxu0 0.0
        %871 = vmatpush2.msra.mxu0 0.0
        %872 = vmatprep.subr.mxu0 0.0
        %873 = vmatpush2.msra.mxu0 0.0
        %874 = vmatprep.subr.mxu0 0.0
        %875 = vmatpush2.msra.mxu0 0.0
        %876 = vmatprep.subr.mxu0 0.0
        %877 = vmatpush2.msra.mxu0 0.0
        %878 = vmatprep.subr.mxu0 0.0
        %879 = vmatpush2.msra.mxu0 0.0
        %880 = vmatprep.subr.mxu0 0.0
        %881 = vmatpush2.msra.mxu0 0.0
        %882 = vmatprep.mubr.f32.mxu0 0.0
        %883 = vmatmul.mubr.f32.gmra.mxu0 %v807
        %v884 = vpop.f32.mrf.mxu0
        %v885 = vadd.f32 %v788, %v884
        %v886 = vpop.f32.mrf.mxu0
        %v887 = vadd.f32 %v788, %v886
        %888 = vmatprep.mubr.f32.mxu0 0.0
        %889 = vmatmul.mubr.f32.gmra.mxu0 %v810
        %v890 = vpop.f32.mrf.mxu0
        %v891 = vadd.f32 %v793, %v890
        %v892 = vpop.f32.mrf.mxu0
        %v893 = vadd.f32 %v793, %v892
        %894 = vmatprep.mubr.f32.mxu0 0.0
        %895 = vmatmul.mubr.f32.gmra.mxu0 %v813
        %v896 = vpop.f32.mrf.mxu0
        %v897 = vadd.f32 %v798, %v896
        %v898 = vpop.f32.mrf.mxu0
        %v899 = vadd.f32 %v798, %v898
        %900 = vmatprep.mubr.f32.mxu0 0.0
        %901 = vmatmul.mubr.f32.gmra.mxu0 %v816
        %v902 = vpop.f32.mrf.mxu0
        %v903 = vadd.f32 %v803, %v902
        %v904 = vpop.f32.mrf.mxu0
        %v905 = vadd.f32 %v803, %v904
        %906 = vdwg.mxu0
        %907 = vmatprep.subr.mxu0 0.0
        %908 = vmatpush1.msra.mxu0 0.0
        %909 = vmatprep.subr.mxu0 0.0
        %910 = vmatpush1.msra.mxu0 0.0
        %911 = vmatprep.subr.mxu0 0.0
        %912 = vmatpush1.msra.mxu0 0.0
        %913 = vmatprep.subr.mxu0 0.0
        %914 = vmatpush1.msra.mxu0 0.0
        %915 = vmatprep.subr.mxu0 0.0
        %916 = vmatpush1.msra.mxu0 0.0
        %917 = vmatprep.subr.mxu0 0.0
        %918 = vmatpush1.msra.mxu0 0.0
        %919 = vmatprep.subr.mxu0 0.0
        %920 = vmatpush1.msra.mxu0 0.0
        %921 = vmatprep.subr.mxu0 0.0
        %922 = vmatpush1.msra.mxu0 0.0
        %923 = vmatprep.subr.mxu0 0.0
        %924 = vmatpush1.msra.mxu0 0.0
        %925 = vmatprep.subr.mxu0 0.0
        %926 = vmatpush1.msra.mxu0 0.0
        %927 = vmatprep.subr.mxu0 0.0
        %928 = vmatpush1.msra.mxu0 0.0
        %929 = vmatprep.subr.mxu0 0.0
        %930 = vmatpush1.msra.mxu0 0.0
        %931 = vmatprep.subr.mxu0 %v597
        %932 = vmatpush1.msra.mxu0 %v595
        %933 = vmatprep.subr.mxu0 %v591
        %934 = vmatpush1.msra.mxu0 %v589
        %935 = vmatprep.subr.mxu0 %v585
        %936 = vmatpush1.msra.mxu0 %v583
        %937 = vmatprep.subr.mxu0 %v579
        %938 = vmatpush1.msra.mxu0 %v577
        %939 = vmatprep.subr.mxu0 0.0
        %940 = vmatpush2.msra.mxu0 0.0
        %941 = vmatprep.subr.mxu0 0.0
        %942 = vmatpush2.msra.mxu0 0.0
        %943 = vmatprep.subr.mxu0 0.0
        %944 = vmatpush2.msra.mxu0 0.0
        %945 = vmatprep.subr.mxu0 0.0
        %946 = vmatpush2.msra.mxu0 0.0
        %947 = vmatprep.subr.mxu0 0.0
        %948 = vmatpush2.msra.mxu0 0.0
        %949 = vmatprep.subr.mxu0 0.0
        %950 = vmatpush2.msra.mxu0 0.0
        %951 = vmatprep.subr.mxu0 0.0
        %952 = vmatpush2.msra.mxu0 0.0
        %953 = vmatprep.subr.mxu0 0.0
        %954 = vmatpush2.msra.mxu0 0.0
        %955 = vmatprep.subr.mxu0 0.0
        %956 = vmatpush2.msra.mxu0 0.0
        %957 = vmatprep.subr.mxu0 0.0
        %958 = vmatpush2.msra.mxu0 0.0
        %959 = vmatprep.subr.mxu0 0.0
        %960 = vmatpush2.msra.mxu0 0.0
        %961 = vmatprep.subr.mxu0 0.0
        %962 = vmatpush2.msra.mxu0 0.0
        %963 = vmatprep.subr.mxu0 0.0
        %964 = vmatpush2.msra.mxu0 0.0
        %965 = vmatprep.subr.mxu0 0.0
        %966 = vmatpush2.msra.mxu0 0.0
        %967 = vmatprep.subr.mxu0 0.0
        %968 = vmatpush2.msra.mxu0 0.0
        %969 = vmatprep.subr.mxu0 0.0
        %970 = vmatpush2.msra.mxu0 0.0
        %971 = vmatprep.mubr.f32.mxu0 0.0
        %972 = vmatmul.mubr.f32.gmra.mxu0 %v807
        %v973 = vpop.f32.mrf.mxu0
        %v974 = vadd.f32 %v788, %v973
        %v975 = vpop.f32.mrf.mxu0
        %v976 = vadd.f32 %v788, %v975
        %977 = vmatprep.mubr.f32.mxu0 0.0
        %978 = vmatmul.mubr.f32.gmra.mxu0 %v810
        %v979 = vpop.f32.mrf.mxu0
        %v980 = vadd.f32 %v793, %v979
        %v981 = vpop.f32.mrf.mxu0
        %v982 = vadd.f32 %v793, %v981
        %983 = vmatprep.mubr.f32.mxu0 0.0
        %984 = vmatmul.mubr.f32.gmra.mxu0 %v813
        %v985 = vpop.f32.mrf.mxu0
        %v986 = vadd.f32 %v798, %v985
        %v987 = vpop.f32.mrf.mxu0
        %v988 = vadd.f32 %v798, %v987
        %989 = vmatprep.mubr.f32.mxu0 0.0
        %990 = vmatmul.mubr.f32.gmra.mxu0 %v816
        %v991 = vpop.f32.mrf.mxu0
        %v992 = vadd.f32 %v803, %v991
        %v993 = vpop.f32.mrf.mxu0
        %v994 = vadd.f32 %v803, %v993
        %995 = vdwg.mxu0
        %996 = vmatprep.subr.mxu0 0.0
        %997 = vmatpush1.msra.mxu0 0.0
        %998 = vmatprep.subr.mxu0 0.0
        %999 = vmatpush1.msra.mxu0 0.0
        %1000 = vmatprep.subr.mxu0 0.0
        %1001 = vmatpush1.msra.mxu0 0.0
        %1002 = vmatprep.subr.mxu0 0.0
        %1003 = vmatpush1.msra.mxu0 0.0
        %1004 = vmatprep.subr.mxu0 0.0
        %1005 = vmatpush1.msra.mxu0 0.0
        %1006 = vmatprep.subr.mxu0 0.0
        %1007 = vmatpush1.msra.mxu0 0.0
        %1008 = vmatprep.subr.mxu0 0.0
        %1009 = vmatpush1.msra.mxu0 0.0
        %1010 = vmatprep.subr.mxu0 0.0
        %1011 = vmatpush1.msra.mxu0 0.0
        %1012 = vmatprep.subr.mxu0 0.0
        %1013 = vmatpush1.msra.mxu0 0.0
        %1014 = vmatprep.subr.mxu0 0.0
        %1015 = vmatpush1.msra.mxu0 0.0
        %1016 = vmatprep.subr.mxu0 0.0
        %1017 = vmatpush1.msra.mxu0 0.0
        %1018 = vmatprep.subr.mxu0 0.0
        %1019 = vmatpush1.msra.mxu0 0.0
        %1020 = vmatprep.subr.mxu0 %v686
        %1021 = vmatpush1.msra.mxu0 %v684
        %1022 = vmatprep.subr.mxu0 %v680
        %1023 = vmatpush1.msra.mxu0 %v678
        %1024 = vmatprep.subr.mxu0 %v674
        %1025 = vmatpush1.msra.mxu0 %v672
        %1026 = vmatprep.subr.mxu0 %v668
        %1027 = vmatpush1.msra.mxu0 %v666
        %1028 = vmatprep.subr.mxu0 0.0
        %1029 = vmatpush2.msra.mxu0 0.0
        %1030 = vmatprep.subr.mxu0 0.0
        %1031 = vmatpush2.msra.mxu0 0.0
        %1032 = vmatprep.subr.mxu0 0.0
        %1033 = vmatpush2.msra.mxu0 0.0
        %1034 = vmatprep.subr.mxu0 0.0
        %1035 = vmatpush2.msra.mxu0 0.0
        %1036 = vmatprep.subr.mxu0 0.0
        %1037 = vmatpush2.msra.mxu0 0.0
        %1038 = vmatprep.subr.mxu0 0.0
        %1039 = vmatpush2.msra.mxu0 0.0
        %1040 = vmatprep.subr.mxu0 0.0
        %1041 = vmatpush2.msra.mxu0 0.0
        %1042 = vmatprep.subr.mxu0 0.0
        %1043 = vmatpush2.msra.mxu0 0.0
        %1044 = vmatprep.subr.mxu0 0.0
        %1045 = vmatpush2.msra.mxu0 0.0
        %1046 = vmatprep.subr.mxu0 0.0
        %1047 = vmatpush2.msra.mxu0 0.0
        %1048 = vmatprep.subr.mxu0 0.0
        %1049 = vmatpush2.msra.mxu0 0.0
        %1050 = vmatprep.subr.mxu0 0.0
        %1051 = vmatpush2.msra.mxu0 0.0
        %1052 = vmatprep.subr.mxu0 0.0
        %1053 = vmatpush2.msra.mxu0 0.0
        %1054 = vmatprep.subr.mxu0 0.0
        %1055 = vmatpush2.msra.mxu0 0.0
        %1056 = vmatprep.subr.mxu0 0.0
        %1057 = vmatpush2.msra.mxu0 0.0
        %1058 = vmatprep.subr.mxu0 0.0
        %1059 = vmatpush2.msra.mxu0 0.0
        %1060 = vmatprep.mubr.f32.mxu0 0.0
        %1061 = vmatmul.mubr.f32.gmra.mxu0 %v807
        %v1062 = vpop.f32.mrf.mxu0
        %v1063 = vadd.f32 %v788, %v1062
        %v1064 = vpop.f32.mrf.mxu0
        %v1065 = vadd.f32 %v788, %v1064
        %1066 = vmatprep.mubr.f32.mxu0 0.0
        %1067 = vmatmul.mubr.f32.gmra.mxu0 %v810
        %v1068 = vpop.f32.mrf.mxu0
        %v1069 = vadd.f32 %v793, %v1068
        %v1070 = vpop.f32.mrf.mxu0
        %v1071 = vadd.f32 %v793, %v1070
        %1072 = vmatprep.mubr.f32.mxu0 0.0
        %1073 = vmatmul.mubr.f32.gmra.mxu0 %v813
        %v1074 = vpop.f32.mrf.mxu0
        %v1075 = vadd.f32 %v798, %v1074
        %v1076 = vpop.f32.mrf.mxu0
        %v1077 = vadd.f32 %v798, %v1076
        %1078 = vmatprep.mubr.f32.mxu0 0.0
        %1079 = vmatmul.mubr.f32.gmra.mxu0 %v816
        %v1080 = vpop.f32.mrf.mxu0
        %v1081 = vadd.f32 %v803, %v1080
        %v1082 = vpop.f32.mrf.mxu0
        %v1083 = vadd.f32 %v803, %v1082
        %1084 = vdwg.mxu0
        %1085 = vmatprep.subr.mxu0 0.0
        %1086 = vmatpush1.msra.mxu0 0.0
        %1087 = vmatprep.subr.mxu0 0.0
        %1088 = vmatpush1.msra.mxu0 0.0
        %1089 = vmatprep.subr.mxu0 0.0
        %1090 = vmatpush1.msra.mxu0 0.0
        %1091 = vmatprep.subr.mxu0 0.0
        %1092 = vmatpush1.msra.mxu0 0.0
        %1093 = vmatprep.subr.mxu0 0.0
        %1094 = vmatpush1.msra.mxu0 0.0
        %1095 = vmatprep.subr.mxu0 0.0
        %1096 = vmatpush1.msra.mxu0 0.0
        %1097 = vmatprep.subr.mxu0 0.0
        %1098 = vmatpush1.msra.mxu0 0.0
        %1099 = vmatprep.subr.mxu0 0.0
        %1100 = vmatpush1.msra.mxu0 0.0
        %1101 = vmatprep.subr.mxu0 0.0
        %1102 = vmatpush1.msra.mxu0 0.0
        %1103 = vmatprep.subr.mxu0 0.0
        %1104 = vmatpush1.msra.mxu0 0.0
        %1105 = vmatprep.subr.mxu0 0.0
        %1106 = vmatpush1.msra.mxu0 0.0
        %1107 = vmatprep.subr.mxu0 0.0
        %1108 = vmatpush1.msra.mxu0 0.0
        %1109 = vmatprep.subr.mxu0 %v775
        %1110 = vmatpush1.msra.mxu0 %v773
        %1111 = vmatprep.subr.mxu0 %v769
        %1112 = vmatpush1.msra.mxu0 %v767
        %1113 = vmatprep.subr.mxu0 %v763
        %1114 = vmatpush1.msra.mxu0 %v761
        %1115 = vmatprep.subr.mxu0 %v757
        %1116 = vmatpush1.msra.mxu0 %v755
        %1117 = vmatprep.subr.mxu0 0.0
        %1118 = vmatpush2.msra.mxu0 0.0
        %1119 = vmatprep.subr.mxu0 0.0
        %1120 = vmatpush2.msra.mxu0 0.0
        %1121 = vmatprep.subr.mxu0 0.0
        %1122 = vmatpush2.msra.mxu0 0.0
        %1123 = vmatprep.subr.mxu0 0.0
        %1124 = vmatpush2.msra.mxu0 0.0
        %1125 = vmatprep.subr.mxu0 0.0
        %1126 = vmatpush2.msra.mxu0 0.0
        %1127 = vmatprep.subr.mxu0 0.0
        %1128 = vmatpush2.msra.mxu0 0.0
        %1129 = vmatprep.subr.mxu0 0.0
        %1130 = vmatpush2.msra.mxu0 0.0
        %1131 = vmatprep.subr.mxu0 0.0
        %1132 = vmatpush2.msra.mxu0 0.0
        %1133 = vmatprep.subr.mxu0 0.0
        %1134 = vmatpush2.msra.mxu0 0.0
        %1135 = vmatprep.subr.mxu0 0.0
        %1136 = vmatpush2.msra.mxu0 0.0
        %1137 = vmatprep.subr.mxu0 0.0
        %1138 = vmatpush2.msra.mxu0 0.0
        %1139 = vmatprep.subr.mxu0 0.0
        %1140 = vmatpush2.msra.mxu0 0.0
        %1141 = vmatprep.subr.mxu0 0.0
        %1142 = vmatpush2.msra.mxu0 0.0
        %1143 = vmatprep.subr.mxu0 0.0
        %1144 = vmatpush2.msra.mxu0 0.0
        %1145 = vmatprep.subr.mxu0 0.0
        %1146 = vmatpush2.msra.mxu0 0.0
        %1147 = vmatprep.subr.mxu0 0.0
        %1148 = vmatpush2.msra.mxu0 0.0
        %1149 = vmatprep.mubr.f32.mxu0 0.0
        %1150 = vmatmul.mubr.f32.gmra.mxu0 %v807
        %v1151 = vpop.f32.mrf.mxu0
        %v1152 = vadd.f32 %v788, %v1151
        %v1153 = vpop.f32.mrf.mxu0
        %v1154 = vadd.f32 %v788, %v1153
        %1155 = vmatprep.mubr.f32.mxu0 0.0
        %1156 = vmatmul.mubr.f32.gmra.mxu0 %v810
        %v1157 = vpop.f32.mrf.mxu0
        %v1158 = vadd.f32 %v793, %v1157
        %v1159 = vpop.f32.mrf.mxu0
        %v1160 = vadd.f32 %v793, %v1159
        %1161 = vmatprep.mubr.f32.mxu0 0.0
        %1162 = vmatmul.mubr.f32.gmra.mxu0 %v813
        %v1163 = vpop.f32.mrf.mxu0
        %v1164 = vadd.f32 %v798, %v1163
        %v1165 = vpop.f32.mrf.mxu0
        %v1166 = vadd.f32 %v798, %v1165
        %1167 = vmatprep.mubr.f32.mxu0 0.0
        %1168 = vmatmul.mubr.f32.gmra.mxu0 %v816
        %v1169 = vpop.f32.mrf.mxu0
        %v1170 = vadd.f32 %v803, %v1169
        %v1171 = vpop.f32.mrf.mxu0
        %v1172 = vadd.f32 %v803, %v1171
        %1173 = vdwg.mxu0
        %v1174 = vmul.f32 %v885, 0.5
        %v1175 = vmul.f32 %v887, 0.5
        %v1176 = vmul.f32 %v974, 0.5
        %v1177 = vmul.f32 %v976, 0.5
        %v1178 = vmul.f32 %v1063, 0.5
        %v1179 = vmul.f32 %v1065, 0.5
        %v1180 = vmul.f32 %v1152, 0.5
        %v1181 = vmul.f32 %v1154, 0.5
        %v1182 = vmul.f32 %v891, 0.5
        %v1183 = vmul.f32 %v893, 0.5
        %v1184 = vmul.f32 %v980, 0.5
        %v1185 = vmul.f32 %v982, 0.5
        %v1186 = vmul.f32 %v1069, 0.5
        %v1187 = vmul.f32 %v1071, 0.5
        %v1188 = vmul.f32 %v1158, 0.5
        %v1189 = vmul.f32 %v1160, 0.5
        %v1190 = vmul.f32 %v897, 0.5
        %v1191 = vmul.f32 %v899, 0.5
        %v1192 = vmul.f32 %v986, 0.5
        %v1193 = vmul.f32 %v988, 0.5
        %v1194 = vmul.f32 %v1075, 0.5
        %v1195 = vmul.f32 %v1077, 0.5
        %v1196 = vmul.f32 %v1164, 0.5
        %v1197 = vmul.f32 %v1166, 0.5
        %v1198 = vmul.f32 %v903, 0.5
        %v1199 = vmul.f32 %v905, 0.5
        %v1200 = vmul.f32 %v992, 0.5
        %v1201 = vmul.f32 %v994, 0.5
        %v1202 = vmul.f32 %v1081, 0.5
        %v1203 = vmul.f32 %v1083, 0.5
        %v1204 = vmul.f32 %v1170, 0.5
        %v1205 = vmul.f32 %v1172, 0.5
        %v1206 = vmul.f32 %v885, 0.70710677
        %v1207 = vmul.f32 %v887, 0.70710677
        %v1208 = vmul.f32 %v974, 0.70710677
        %v1209 = vmul.f32 %v976, 0.70710677
        %v1210 = vmul.f32 %v1063, 0.70710677
        %v1211 = vmul.f32 %v1065, 0.70710677
        %v1212 = vmul.f32 %v1152, 0.70710677
        %v1213 = vmul.f32 %v1154, 0.70710677
        %v1214 = vmul.f32 %v891, 0.70710677
        %v1215 = vmul.f32 %v893, 0.70710677
        %v1216 = vmul.f32 %v980, 0.70710677
        %v1217 = vmul.f32 %v982, 0.70710677
        %v1218 = vmul.f32 %v1069, 0.70710677
        %v1219 = vmul.f32 %v1071, 0.70710677
        %v1220 = vmul.f32 %v1158, 0.70710677
        %v1221 = vmul.f32 %v1160, 0.70710677
        %v1222 = vmul.f32 %v897, 0.70710677
        %v1223 = vmul.f32 %v899, 0.70710677
        %v1224 = vmul.f32 %v986, 0.70710677
        %v1225 = vmul.f32 %v988, 0.70710677
        %v1226 = vmul.f32 %v1075, 0.70710677
        %v1227 = vmul.f32 %v1077, 0.70710677
        %v1228 = vmul.f32 %v1164, 0.70710677
        %v1229 = vmul.f32 %v1166, 0.70710677
        %v1230 = vmul.f32 %v903, 0.70710677
        %v1231 = vmul.f32 %v905, 0.70710677
        %v1232 = vmul.f32 %v992, 0.70710677
        %v1233 = vmul.f32 %v994, 0.70710677
        %v1234 = vmul.f32 %v1081, 0.70710677
        %v1235 = vmul.f32 %v1083, 0.70710677
        %v1236 = vmul.f32 %v1170, 0.70710677
        %v1237 = vmul.f32 %v1172, 0.70710677
        %v1238 = verf.f32.pop %v1206
        %v1239 = verf.f32.pop %v1207
        %v1240 = verf.f32.pop %v1208
        %v1241 = verf.f32.pop %v1209
        %v1242 = verf.f32.pop %v1210
        %v1243 = verf.f32.pop %v1211
        %v1244 = verf.f32.pop %v1212
        %v1245 = verf.f32.pop %v1213
        %v1246 = verf.f32.pop %v1214
        %v1247 = verf.f32.pop %v1215
        %v1248 = verf.f32.pop %v1216
        %v1249 = verf.f32.pop %v1217
        %v1250 = verf.f32.pop %v1218
        %v1251 = verf.f32.pop %v1219
        %v1252 = verf.f32.pop %v1220
        %v1253 = verf.f32.pop %v1221
        %v1254 = verf.f32.pop %v1222
        %v1255 = verf.f32.pop %v1223
        %v1256 = verf.f32.pop %v1224
        %v1257 = verf.f32.pop %v1225
        %v1258 = verf.f32.pop %v1226
        %v1259 = verf.f32.pop %v1227
        %v1260 = verf.f32.pop %v1228
        %v1261 = verf.f32.pop %v1229
        %v1262 = verf.f32.pop %v1230
        %v1263 = verf.f32.pop %v1231
        %v1264 = verf.f32.pop %v1232
        %v1265 = verf.f32.pop %v1233
        %v1266 = verf.f32.pop %v1234
        %v1267 = verf.f32.pop %v1235
        %v1268 = verf.f32.pop %v1236
        %v1269 = verf.f32.pop %v1237
        %v1270 = vadd.f32 %v1238, 1.0
        %v1271 = vadd.f32 %v1239, 1.0
        %v1272 = vadd.f32 %v1240, 1.0
        %v1273 = vadd.f32 %v1241, 1.0
        %v1274 = vadd.f32 %v1242, 1.0
        %v1275 = vadd.f32 %v1243, 1.0
        %v1276 = vadd.f32 %v1244, 1.0
        %v1277 = vadd.f32 %v1245, 1.0
        %v1278 = vadd.f32 %v1246, 1.0
        %v1279 = vadd.f32 %v1247, 1.0
        %v1280 = vadd.f32 %v1248, 1.0
        %v1281 = vadd.f32 %v1249, 1.0
        %v1282 = vadd.f32 %v1250, 1.0
        %v1283 = vadd.f32 %v1251, 1.0
        %v1284 = vadd.f32 %v1252, 1.0
        %v1285 = vadd.f32 %v1253, 1.0
        %v1286 = vadd.f32 %v1254, 1.0
        %v1287 = vadd.f32 %v1255, 1.0
        %v1288 = vadd.f32 %v1256, 1.0
        %v1289 = vadd.f32 %v1257, 1.0
        %v1290 = vadd.f32 %v1258, 1.0
        %v1291 = vadd.f32 %v1259, 1.0
        %v1292 = vadd.f32 %v1260, 1.0
        %v1293 = vadd.f32 %v1261, 1.0
        %v1294 = vadd.f32 %v1262, 1.0
        %v1295 = vadd.f32 %v1263, 1.0
        %v1296 = vadd.f32 %v1264, 1.0
        %v1297 = vadd.f32 %v1265, 1.0
        %v1298 = vadd.f32 %v1266, 1.0
        %v1299 = vadd.f32 %v1267, 1.0
        %v1300 = vadd.f32 %v1268, 1.0
        %v1301 = vadd.f32 %v1269, 1.0
        %v1302 = vmul.f32 %v1174, %v1270
        %v1303 = vmul.f32 %v1175, %v1271
        %v1304 = vmul.f32 %v1176, %v1272
        %v1305 = vmul.f32 %v1177, %v1273
        %v1306 = vmul.f32 %v1178, %v1274
        %v1307 = vmul.f32 %v1179, %v1275
        %v1308 = vmul.f32 %v1180, %v1276
        %v1309 = vmul.f32 %v1181, %v1277
        %v1310 = vmul.f32 %v1182, %v1278
        %v1311 = vmul.f32 %v1183, %v1279
        %v1312 = vmul.f32 %v1184, %v1280
        %v1313 = vmul.f32 %v1185, %v1281
        %v1314 = vmul.f32 %v1186, %v1282
        %v1315 = vmul.f32 %v1187, %v1283
        %v1316 = vmul.f32 %v1188, %v1284
        %v1317 = vmul.f32 %v1189, %v1285
        %v1318 = vmul.f32 %v1190, %v1286
        %v1319 = vmul.f32 %v1191, %v1287
        %v1320 = vmul.f32 %v1192, %v1288
        %v1321 = vmul.f32 %v1193, %v1289
        %v1322 = vmul.f32 %v1194, %v1290
        %v1323 = vmul.f32 %v1195, %v1291
        %v1324 = vmul.f32 %v1196, %v1292
        %v1325 = vmul.f32 %v1197, %v1293
        %v1326 = vmul.f32 %v1198, %v1294
        %v1327 = vmul.f32 %v1199, %v1295
        %v1328 = vmul.f32 %v1200, %v1296
        %v1329 = vmul.f32 %v1201, %v1297
        %v1330 = vmul.f32 %v1202, %v1298
        %v1331 = vmul.f32 %v1203, %v1299
        %v1332 = vmul.f32 %v1204, %v1300
        %v1333 = vmul.f32 %v1205, %v1301
        %v1334 = vld [vmem:[%s5] sm:$0xff]
        %v1335 = vld [vmem:[%s5 + $0x8] sm:$0xff]
        %v1336 = vld [vmem:[%s5 + $0x10] sm:$0xff]
        %v1337 = vld [vmem:[%s5 + $0x18] sm:$0xff]
        %v1338 = vld [vmem:[%s6] sm:$0xff]
        %v1339 = vld [vmem:[%s6 + $0x8] sm:$0xff]
        %v1340 = vld [vmem:[%s6 + $0x10] sm:$0xff]
        %v1341 = vld [vmem:[%s6 + $0x18] sm:$0xff]
        %1343 = vset.pattern.permute.xlu0 0
        %1344 = vperm.xlu0 %1343, %v1338
        %v1345 = vpop.permute.xlu0 %1344
        %1348 = vset.pattern.permute.xlu0 0
        %1349 = vperm.xlu0 %1348, %v1339
        %v1350 = vpop.permute.xlu0 %1349
        %1353 = vset.pattern.permute.xlu0 0
        %1354 = vperm.xlu0 %1353, %v1340
        %v1355 = vpop.permute.xlu0 %1354
        %1358 = vset.pattern.permute.xlu0 0
        %1359 = vperm.xlu0 %1358, %v1341
        %v1360 = vpop.permute.xlu0 %1359
        %v1363 = vsel %vm805, %v1334, 0
        %v1366 = vsel %vm805, %v1335, 0
        %v1369 = vsel %vm805, %v1336, 0
        %v1372 = vsel %vm805, %v1337, 0
        %1374 = vmatprep.subr.mxu0 0.0
        %1375 = vmatpush1.msra.mxu0 0.0
        %1376 = vmatprep.subr.mxu0 0.0
        %1377 = vmatpush1.msra.mxu0 0.0
        %1378 = vmatprep.subr.mxu0 0.0
        %1379 = vmatpush1.msra.mxu0 0.0
        %1380 = vmatprep.subr.mxu0 0.0
        %1381 = vmatpush1.msra.mxu0 0.0
        %1382 = vmatprep.subr.mxu0 0.0
        %1383 = vmatpush1.msra.mxu0 0.0
        %1384 = vmatprep.subr.mxu0 0.0
        %1385 = vmatpush1.msra.mxu0 0.0
        %1386 = vmatprep.subr.mxu0 0.0
        %1387 = vmatpush1.msra.mxu0 0.0
        %1388 = vmatprep.subr.mxu0 0.0
        %1389 = vmatpush1.msra.mxu0 0.0
        %1390 = vmatprep.subr.mxu0 0.0
        %1391 = vmatpush1.msra.mxu0 0.0
        %1392 = vmatprep.subr.mxu0 0.0
        %1393 = vmatpush1.msra.mxu0 0.0
        %1394 = vmatprep.subr.mxu0 0.0
        %1395 = vmatpush1.msra.mxu0 0.0
        %1396 = vmatprep.subr.mxu0 0.0
        %1397 = vmatpush1.msra.mxu0 0.0
        %1398 = vmatprep.subr.mxu0 %v1327
        %1399 = vmatpush1.msra.mxu0 %v1326
        %1400 = vmatprep.subr.mxu0 %v1319
        %1401 = vmatpush1.msra.mxu0 %v1318
        %1402 = vmatprep.subr.mxu0 %v1311
        %1403 = vmatpush1.msra.mxu0 %v1310
        %1404 = vmatprep.subr.mxu0 %v1303
        %1405 = vmatpush1.msra.mxu0 %v1302
        %1406 = vmatprep.subr.mxu0 0.0
        %1407 = vmatpush2.msra.mxu0 0.0
        %1408 = vmatprep.subr.mxu0 0.0
        %1409 = vmatpush2.msra.mxu0 0.0
        %1410 = vmatprep.subr.mxu0 0.0
        %1411 = vmatpush2.msra.mxu0 0.0
        %1412 = vmatprep.subr.mxu0 0.0
        %1413 = vmatpush2.msra.mxu0 0.0
        %1414 = vmatprep.subr.mxu0 0.0
        %1415 = vmatpush2.msra.mxu0 0.0
        %1416 = vmatprep.subr.mxu0 0.0
        %1417 = vmatpush2.msra.mxu0 0.0
        %1418 = vmatprep.subr.mxu0 0.0
        %1419 = vmatpush2.msra.mxu0 0.0
        %1420 = vmatprep.subr.mxu0 0.0
        %1421 = vmatpush2.msra.mxu0 0.0
        %1422 = vmatprep.subr.mxu0 0.0
        %1423 = vmatpush2.msra.mxu0 0.0
        %1424 = vmatprep.subr.mxu0 0.0
        %1425 = vmatpush2.msra.mxu0 0.0
        %1426 = vmatprep.subr.mxu0 0.0
        %1427 = vmatpush2.msra.mxu0 0.0
        %1428 = vmatprep.subr.mxu0 0.0
        %1429 = vmatpush2.msra.mxu0 0.0
        %1430 = vmatprep.subr.mxu0 0.0
        %1431 = vmatpush2.msra.mxu0 0.0
        %1432 = vmatprep.subr.mxu0 0.0
        %1433 = vmatpush2.msra.mxu0 0.0
        %1434 = vmatprep.subr.mxu0 0.0
        %1435 = vmatpush2.msra.mxu0 0.0
        %1436 = vmatprep.subr.mxu0 0.0
        %1437 = vmatpush2.msra.mxu0 0.0
        %1438 = vmatprep.mubr.f32.mxu0 0.0
        %1439 = vmatmul.mubr.f32.gmra.mxu0 %v1363
        %v1440 = vpop.f32.mrf.mxu0
        %v1441 = vadd.f32 %v1345, %v1440
        %v1442 = vpop.f32.mrf.mxu0
        %v1443 = vadd.f32 %v1345, %v1442
        %1444 = vmatprep.mubr.f32.mxu0 0.0
        %1445 = vmatmul.mubr.f32.gmra.mxu0 %v1366
        %v1446 = vpop.f32.mrf.mxu0
        %v1447 = vadd.f32 %v1350, %v1446
        %v1448 = vpop.f32.mrf.mxu0
        %v1449 = vadd.f32 %v1350, %v1448
        %1450 = vmatprep.mubr.f32.mxu0 0.0
        %1451 = vmatmul.mubr.f32.gmra.mxu0 %v1369
        %v1452 = vpop.f32.mrf.mxu0
        %v1453 = vadd.f32 %v1355, %v1452
        %v1454 = vpop.f32.mrf.mxu0
        %v1455 = vadd.f32 %v1355, %v1454
        %1456 = vmatprep.mubr.f32.mxu0 0.0
        %1457 = vmatmul.mubr.f32.gmra.mxu0 %v1372
        %v1458 = vpop.f32.mrf.mxu0
        %v1459 = vadd.f32 %v1360, %v1458
        %v1460 = vpop.f32.mrf.mxu0
        %v1461 = vadd.f32 %v1360, %v1460
        %1462 = vdwg.mxu0
        %1463 = vmatprep.subr.mxu0 0.0
        %1464 = vmatpush1.msra.mxu0 0.0
        %1465 = vmatprep.subr.mxu0 0.0
        %1466 = vmatpush1.msra.mxu0 0.0
        %1467 = vmatprep.subr.mxu0 0.0
        %1468 = vmatpush1.msra.mxu0 0.0
        %1469 = vmatprep.subr.mxu0 0.0
        %1470 = vmatpush1.msra.mxu0 0.0
        %1471 = vmatprep.subr.mxu0 0.0
        %1472 = vmatpush1.msra.mxu0 0.0
        %1473 = vmatprep.subr.mxu0 0.0
        %1474 = vmatpush1.msra.mxu0 0.0
        %1475 = vmatprep.subr.mxu0 0.0
        %1476 = vmatpush1.msra.mxu0 0.0
        %1477 = vmatprep.subr.mxu0 0.0
        %1478 = vmatpush1.msra.mxu0 0.0
        %1479 = vmatprep.subr.mxu0 0.0
        %1480 = vmatpush1.msra.mxu0 0.0
        %1481 = vmatprep.subr.mxu0 0.0
        %1482 = vmatpush1.msra.mxu0 0.0
        %1483 = vmatprep.subr.mxu0 0.0
        %1484 = vmatpush1.msra.mxu0 0.0
        %1485 = vmatprep.subr.mxu0 0.0
        %1486 = vmatpush1.msra.mxu0 0.0
        %1487 = vmatprep.subr.mxu0 %v1329
        %1488 = vmatpush1.msra.mxu0 %v1328
        %1489 = vmatprep.subr.mxu0 %v1321
        %1490 = vmatpush1.msra.mxu0 %v1320
        %1491 = vmatprep.subr.mxu0 %v1313
        %1492 = vmatpush1.msra.mxu0 %v1312
        %1493 = vmatprep.subr.mxu0 %v1305
        %1494 = vmatpush1.msra.mxu0 %v1304
        %1495 = vmatprep.subr.mxu0 0.0
        %1496 = vmatpush2.msra.mxu0 0.0
        %1497 = vmatprep.subr.mxu0 0.0
        %1498 = vmatpush2.msra.mxu0 0.0
        %1499 = vmatprep.subr.mxu0 0.0
        %1500 = vmatpush2.msra.mxu0 0.0
        %1501 = vmatprep.subr.mxu0 0.0
        %1502 = vmatpush2.msra.mxu0 0.0
        %1503 = vmatprep.subr.mxu0 0.0
        %1504 = vmatpush2.msra.mxu0 0.0
        %1505 = vmatprep.subr.mxu0 0.0
        %1506 = vmatpush2.msra.mxu0 0.0
        %1507 = vmatprep.subr.mxu0 0.0
        %1508 = vmatpush2.msra.mxu0 0.0
        %1509 = vmatprep.subr.mxu0 0.0
        %1510 = vmatpush2.msra.mxu0 0.0
        %1511 = vmatprep.subr.mxu0 0.0
        %1512 = vmatpush2.msra.mxu0 0.0
        %1513 = vmatprep.subr.mxu0 0.0
        %1514 = vmatpush2.msra.mxu0 0.0
        %1515 = vmatprep.subr.mxu0 0.0
        %1516 = vmatpush2.msra.mxu0 0.0
        %1517 = vmatprep.subr.mxu0 0.0
        %1518 = vmatpush2.msra.mxu0 0.0
        %1519 = vmatprep.subr.mxu0 0.0
        %1520 = vmatpush2.msra.mxu0 0.0
        %1521 = vmatprep.subr.mxu0 0.0
        %1522 = vmatpush2.msra.mxu0 0.0
        %1523 = vmatprep.subr.mxu0 0.0
        %1524 = vmatpush2.msra.mxu0 0.0
        %1525 = vmatprep.subr.mxu0 0.0
        %1526 = vmatpush2.msra.mxu0 0.0
        %1527 = vmatprep.mubr.f32.mxu0 0.0
        %1528 = vmatmul.mubr.f32.gmra.mxu0 %v1363
        %v1529 = vpop.f32.mrf.mxu0
        %v1530 = vadd.f32 %v1345, %v1529
        %v1531 = vpop.f32.mrf.mxu0
        %v1532 = vadd.f32 %v1345, %v1531
        %1533 = vmatprep.mubr.f32.mxu0 0.0
        %1534 = vmatmul.mubr.f32.gmra.mxu0 %v1366
        %v1535 = vpop.f32.mrf.mxu0
        %v1536 = vadd.f32 %v1350, %v1535
        %v1537 = vpop.f32.mrf.mxu0
        %v1538 = vadd.f32 %v1350, %v1537
        %1539 = vmatprep.mubr.f32.mxu0 0.0
        %1540 = vmatmul.mubr.f32.gmra.mxu0 %v1369
        %v1541 = vpop.f32.mrf.mxu0
        %v1542 = vadd.f32 %v1355, %v1541
        %v1543 = vpop.f32.mrf.mxu0
        %v1544 = vadd.f32 %v1355, %v1543
        %1545 = vmatprep.mubr.f32.mxu0 0.0
        %1546 = vmatmul.mubr.f32.gmra.mxu0 %v1372
        %v1547 = vpop.f32.mrf.mxu0
        %v1548 = vadd.f32 %v1360, %v1547
        %v1549 = vpop.f32.mrf.mxu0
        %v1550 = vadd.f32 %v1360, %v1549
        %1551 = vdwg.mxu0
        %1552 = vmatprep.subr.mxu0 0.0
        %1553 = vmatpush1.msra.mxu0 0.0
        %1554 = vmatprep.subr.mxu0 0.0
        %1555 = vmatpush1.msra.mxu0 0.0
        %1556 = vmatprep.subr.mxu0 0.0
        %1557 = vmatpush1.msra.mxu0 0.0
        %1558 = vmatprep.subr.mxu0 0.0
        %1559 = vmatpush1.msra.mxu0 0.0
        %1560 = vmatprep.subr.mxu0 0.0
        %1561 = vmatpush1.msra.mxu0 0.0
        %1562 = vmatprep.subr.mxu0 0.0
        %1563 = vmatpush1.msra.mxu0 0.0
        %1564 = vmatprep.subr.mxu0 0.0
        %1565 = vmatpush1.msra.mxu0 0.0
        %1566 = vmatprep.subr.mxu0 0.0
        %1567 = vmatpush1.msra.mxu0 0.0
        %1568 = vmatprep.subr.mxu0 0.0
        %1569 = vmatpush1.msra.mxu0 0.0
        %1570 = vmatprep.subr.mxu0 0.0
        %1571 = vmatpush1.msra.mxu0 0.0
        %1572 = vmatprep.subr.mxu0 0.0
        %1573 = vmatpush1.msra.mxu0 0.0
        %1574 = vmatprep.subr.mxu0 0.0
        %1575 = vmatpush1.msra.mxu0 0.0
        %1576 = vmatprep.subr.mxu0 %v1331
        %1577 = vmatpush1.msra.mxu0 %v1330
        %1578 = vmatprep.subr.mxu0 %v1323
        %1579 = vmatpush1.msra.mxu0 %v1322
        %1580 = vmatprep.subr.mxu0 %v1315
        %1581 = vmatpush1.msra.mxu0 %v1314
        %1582 = vmatprep.subr.mxu0 %v1307
        %1583 = vmatpush1.msra.mxu0 %v1306
        %1584 = vmatprep.subr.mxu0 0.0
        %1585 = vmatpush2.msra.mxu0 0.0
        %1586 = vmatprep.subr.mxu0 0.0
        %1587 = vmatpush2.msra.mxu0 0.0
        %1588 = vmatprep.subr.mxu0 0.0
        %1589 = vmatpush2.msra.mxu0 0.0
        %1590 = vmatprep.subr.mxu0 0.0
        %1591 = vmatpush2.msra.mxu0 0.0
        %1592 = vmatprep.subr.mxu0 0.0
        %1593 = vmatpush2.msra.mxu0 0.0
        %1594 = vmatprep.subr.mxu0 0.0
        %1595 = vmatpush2.msra.mxu0 0.0
        %1596 = vmatprep.subr.mxu0 0.0
        %1597 = vmatpush2.msra.mxu0 0.0
        %1598 = vmatprep.subr.mxu0 0.0
        %1599 = vmatpush2.msra.mxu0 0.0
        %1600 = vmatprep.subr.mxu0 0.0
        %1601 = vmatpush2.msra.mxu0 0.0
        %1602 = vmatprep.subr.mxu0 0.0
        %1603 = vmatpush2.msra.mxu0 0.0
        %1604 = vmatprep.subr.mxu0 0.0
        %1605 = vmatpush2.msra.mxu0 0.0
        %1606 = vmatprep.subr.mxu0 0.0
        %1607 = vmatpush2.msra.mxu0 0.0
        %1608 = vmatprep.subr.mxu0 0.0
        %1609 = vmatpush2.msra.mxu0 0.0
        %1610 = vmatprep.subr.mxu0 0.0
        %1611 = vmatpush2.msra.mxu0 0.0
        %1612 = vmatprep.subr.mxu0 0.0
        %1613 = vmatpush2.msra.mxu0 0.0
        %1614 = vmatprep.subr.mxu0 0.0
        %1615 = vmatpush2.msra.mxu0 0.0
        %1616 = vmatprep.mubr.f32.mxu0 0.0
        %1617 = vmatmul.mubr.f32.gmra.mxu0 %v1363
        %v1618 = vpop.f32.mrf.mxu0
        %v1619 = vadd.f32 %v1345, %v1618
        %v1620 = vpop.f32.mrf.mxu0
        %v1621 = vadd.f32 %v1345, %v1620
        %1622 = vmatprep.mubr.f32.mxu0 0.0
        %1623 = vmatmul.mubr.f32.gmra.mxu0 %v1366
        %v1624 = vpop.f32.mrf.mxu0
        %v1625 = vadd.f32 %v1350, %v1624
        %v1626 = vpop.f32.mrf.mxu0
        %v1627 = vadd.f32 %v1350, %v1626
        %1628 = vmatprep.mubr.f32.mxu0 0.0
        %1629 = vmatmul.mubr.f32.gmra.mxu0 %v1369
        %v1630 = vpop.f32.mrf.mxu0
        %v1631 = vadd.f32 %v1355, %v1630
        %v1632 = vpop.f32.mrf.mxu0
        %v1633 = vadd.f32 %v1355, %v1632
        %1634 = vmatprep.mubr.f32.mxu0 0.0
        %1635 = vmatmul.mubr.f32.gmra.mxu0 %v1372
        %v1636 = vpop.f32.mrf.mxu0
        %v1637 = vadd.f32 %v1360, %v1636
        %v1638 = vpop.f32.mrf.mxu0
        %v1639 = vadd.f32 %v1360, %v1638
        %1640 = vdwg.mxu0
        %1641 = vmatprep.subr.mxu0 0.0
        %1642 = vmatpush1.msra.mxu0 0.0
        %1643 = vmatprep.subr.mxu0 0.0
        %1644 = vmatpush1.msra.mxu0 0.0
        %1645 = vmatprep.subr.mxu0 0.0
        %1646 = vmatpush1.msra.mxu0 0.0
        %1647 = vmatprep.subr.mxu0 0.0
        %1648 = vmatpush1.msra.mxu0 0.0
        %1649 = vmatprep.subr.mxu0 0.0
        %1650 = vmatpush1.msra.mxu0 0.0
        %1651 = vmatprep.subr.mxu0 0.0
        %1652 = vmatpush1.msra.mxu0 0.0
        %1653 = vmatprep.subr.mxu0 0.0
        %1654 = vmatpush1.msra.mxu0 0.0
        %1655 = vmatprep.subr.mxu0 0.0
        %1656 = vmatpush1.msra.mxu0 0.0
        %1657 = vmatprep.subr.mxu0 0.0
        %1658 = vmatpush1.msra.mxu0 0.0
        %1659 = vmatprep.subr.mxu0 0.0
        %1660 = vmatpush1.msra.mxu0 0.0
        %1661 = vmatprep.subr.mxu0 0.0
        %1662 = vmatpush1.msra.mxu0 0.0
        %1663 = vmatprep.subr.mxu0 0.0
        %1664 = vmatpush1.msra.mxu0 0.0
        %1665 = vmatprep.subr.mxu0 %v1333
        %1666 = vmatpush1.msra.mxu0 %v1332
        %1667 = vmatprep.subr.mxu0 %v1325
        %1668 = vmatpush1.msra.mxu0 %v1324
        %1669 = vmatprep.subr.mxu0 %v1317
        %1670 = vmatpush1.msra.mxu0 %v1316
        %1671 = vmatprep.subr.mxu0 %v1309
        %1672 = vmatpush1.msra.mxu0 %v1308
        %1673 = vmatprep.subr.mxu0 0.0
        %1674 = vmatpush2.msra.mxu0 0.0
        %1675 = vmatprep.subr.mxu0 0.0
        %1676 = vmatpush2.msra.mxu0 0.0
        %1677 = vmatprep.subr.mxu0 0.0
        %1678 = vmatpush2.msra.mxu0 0.0
        %1679 = vmatprep.subr.mxu0 0.0
        %1680 = vmatpush2.msra.mxu0 0.0
        %1681 = vmatprep.subr.mxu0 0.0
        %1682 = vmatpush2.msra.mxu0 0.0
        %1683 = vmatprep.subr.mxu0 0.0
        %1684 = vmatpush2.msra.mxu0 0.0
        %1685 = vmatprep.subr.mxu0 0.0
        %1686 = vmatpush2.msra.mxu0 0.0
        %1687 = vmatprep.subr.mxu0 0.0
        %1688 = vmatpush2.msra.mxu0 0.0
        %1689 = vmatprep.subr.mxu0 0.0
        %1690 = vmatpush2.msra.mxu0 0.0
        %1691 = vmatprep.subr.mxu0 0.0
        %1692 = vmatpush2.msra.mxu0 0.0
        %1693 = vmatprep.subr.mxu0 0.0
        %1694 = vmatpush2.msra.mxu0 0.0
        %1695 = vmatprep.subr.mxu0 0.0
        %1696 = vmatpush2.msra.mxu0 0.0
        %1697 = vmatprep.subr.mxu0 0.0
        %1698 = vmatpush2.msra.mxu0 0.0
        %1699 = vmatprep.subr.mxu0 0.0
        %1700 = vmatpush2.msra.mxu0 0.0
        %1701 = vmatprep.subr.mxu0 0.0
        %1702 = vmatpush2.msra.mxu0 0.0
        %1703 = vmatprep.subr.mxu0 0.0
        %1704 = vmatpush2.msra.mxu0 0.0
        %1705 = vmatprep.mubr.f32.mxu0 0.0
        %1706 = vmatmul.mubr.f32.gmra.mxu0 %v1363
        %v1707 = vpop.f32.mrf.mxu0
        %v1708 = vadd.f32 %v1345, %v1707
        %v1709 = vpop.f32.mrf.mxu0
        %v1710 = vadd.f32 %v1345, %v1709
        %1711 = vmatprep.mubr.f32.mxu0 0.0
        %1712 = vmatmul.mubr.f32.gmra.mxu0 %v1366
        %v1713 = vpop.f32.mrf.mxu0
        %v1714 = vadd.f32 %v1350, %v1713
        %v1715 = vpop.f32.mrf.mxu0
        %v1716 = vadd.f32 %v1350, %v1715
        %1717 = vmatprep.mubr.f32.mxu0 0.0
        %1718 = vmatmul.mubr.f32.gmra.mxu0 %v1369
        %v1719 = vpop.f32.mrf.mxu0
        %v1720 = vadd.f32 %v1355, %v1719
        %v1721 = vpop.f32.mrf.mxu0
        %v1722 = vadd.f32 %v1355, %v1721
        %1723 = vmatprep.mubr.f32.mxu0 0.0
        %1724 = vmatmul.mubr.f32.gmra.mxu0 %v1372
        %v1725 = vpop.f32.mrf.mxu0
        %v1726 = vadd.f32 %v1360, %v1725
        %v1727 = vpop.f32.mrf.mxu0
        %v1728 = vadd.f32 %v1360, %v1727
        %1729 = vdwg.mxu0
        %v1730 = vmul.f32 %v1441, 0.5
        %v1731 = vmul.f32 %v1443, 0.5
        %v1732 = vmul.f32 %v1530, 0.5
        %v1733 = vmul.f32 %v1532, 0.5
        %v1734 = vmul.f32 %v1619, 0.5
        %v1735 = vmul.f32 %v1621, 0.5
        %v1736 = vmul.f32 %v1708, 0.5
        %v1737 = vmul.f32 %v1710, 0.5
        %v1738 = vmul.f32 %v1447, 0.5
        %v1739 = vmul.f32 %v1449, 0.5
        %v1740 = vmul.f32 %v1536, 0.5
        %v1741 = vmul.f32 %v1538, 0.5
        %v1742 = vmul.f32 %v1625, 0.5
        %v1743 = vmul.f32 %v1627, 0.5
        %v1744 = vmul.f32 %v1714, 0.5
        %v1745 = vmul.f32 %v1716, 0.5
        %v1746 = vmul.f32 %v1453, 0.5
        %v1747 = vmul.f32 %v1455, 0.5
        %v1748 = vmul.f32 %v1542, 0.5
        %v1749 = vmul.f32 %v1544, 0.5
        %v1750 = vmul.f32 %v1631, 0.5
        %v1751 = vmul.f32 %v1633, 0.5
        %v1752 = vmul.f32 %v1720, 0.5
        %v1753 = vmul.f32 %v1722, 0.5
        %v1754 = vmul.f32 %v1459, 0.5
        %v1755 = vmul.f32 %v1461, 0.5
        %v1756 = vmul.f32 %v1548, 0.5
        %v1757 = vmul.f32 %v1550, 0.5
        %v1758 = vmul.f32 %v1637, 0.5
        %v1759 = vmul.f32 %v1639, 0.5
        %v1760 = vmul.f32 %v1726, 0.5
        %v1761 = vmul.f32 %v1728, 0.5
        %v1762 = vmul.f32 %v1441, 0.70710677
        %v1763 = vmul.f32 %v1443, 0.70710677
        %v1764 = vmul.f32 %v1530, 0.70710677
        %v1765 = vmul.f32 %v1532, 0.70710677
        %v1766 = vmul.f32 %v1619, 0.70710677
        %v1767 = vmul.f32 %v1621, 0.70710677
        %v1768 = vmul.f32 %v1708, 0.70710677
        %v1769 = vmul.f32 %v1710, 0.70710677
        %v1770 = vmul.f32 %v1447, 0.70710677
        %v1771 = vmul.f32 %v1449, 0.70710677
        %v1772 = vmul.f32 %v1536, 0.70710677
        %v1773 = vmul.f32 %v1538, 0.70710677
        %v1774 = vmul.f32 %v1625, 0.70710677
        %v1775 = vmul.f32 %v1627, 0.70710677
        %v1776 = vmul.f32 %v1714, 0.70710677
        %v1777 = vmul.f32 %v1716, 0.70710677
        %v1778 = vmul.f32 %v1453, 0.70710677
        %v1779 = vmul.f32 %v1455, 0.70710677
        %v1780 = vmul.f32 %v1542, 0.70710677
        %v1781 = vmul.f32 %v1544, 0.70710677
        %v1782 = vmul.f32 %v1631, 0.70710677
        %v1783 = vmul.f32 %v1633, 0.70710677
        %v1784 = vmul.f32 %v1720, 0.70710677
        %v1785 = vmul.f32 %v1722, 0.70710677
        %v1786 = vmul.f32 %v1459, 0.70710677
        %v1787 = vmul.f32 %v1461, 0.70710677
        %v1788 = vmul.f32 %v1548, 0.70710677
        %v1789 = vmul.f32 %v1550, 0.70710677
        %v1790 = vmul.f32 %v1637, 0.70710677
        %v1791 = vmul.f32 %v1639, 0.70710677
        %v1792 = vmul.f32 %v1726, 0.70710677
        %v1793 = vmul.f32 %v1728, 0.70710677
        %v1794 = verf.f32.pop %v1762
        %v1795 = verf.f32.pop %v1763
        %v1796 = verf.f32.pop %v1764
        %v1797 = verf.f32.pop %v1765
        %v1798 = verf.f32.pop %v1766
        %v1799 = verf.f32.pop %v1767
        %v1800 = verf.f32.pop %v1768
        %v1801 = verf.f32.pop %v1769
        %v1802 = verf.f32.pop %v1770
        %v1803 = verf.f32.pop %v1771
        %v1804 = verf.f32.pop %v1772
        %v1805 = verf.f32.pop %v1773
        %v1806 = verf.f32.pop %v1774
        %v1807 = verf.f32.pop %v1775
        %v1808 = verf.f32.pop %v1776
        %v1809 = verf.f32.pop %v1777
        %v1810 = verf.f32.pop %v1778
        %v1811 = verf.f32.pop %v1779
        %v1812 = verf.f32.pop %v1780
        %v1813 = verf.f32.pop %v1781
        %v1814 = verf.f32.pop %v1782
        %v1815 = verf.f32.pop %v1783
        %v1816 = verf.f32.pop %v1784
        %v1817 = verf.f32.pop %v1785
        %v1818 = verf.f32.pop %v1786
        %v1819 = verf.f32.pop %v1787
        %v1820 = verf.f32.pop %v1788
        %v1821 = verf.f32.pop %v1789
        %v1822 = verf.f32.pop %v1790
        %v1823 = verf.f32.pop %v1791
        %v1824 = verf.f32.pop %v1792
        %v1825 = verf.f32.pop %v1793
        %v1826 = vadd.f32 %v1794, 1.0
        %v1827 = vadd.f32 %v1795, 1.0
        %v1828 = vadd.f32 %v1796, 1.0
        %v1829 = vadd.f32 %v1797, 1.0
        %v1830 = vadd.f32 %v1798, 1.0
        %v1831 = vadd.f32 %v1799, 1.0
        %v1832 = vadd.f32 %v1800, 1.0
        %v1833 = vadd.f32 %v1801, 1.0
        %v1834 = vadd.f32 %v1802, 1.0
        %v1835 = vadd.f32 %v1803, 1.0
        %v1836 = vadd.f32 %v1804, 1.0
        %v1837 = vadd.f32 %v1805, 1.0
        %v1838 = vadd.f32 %v1806, 1.0
        %v1839 = vadd.f32 %v1807, 1.0
        %v1840 = vadd.f32 %v1808, 1.0
        %v1841 = vadd.f32 %v1809, 1.0
        %v1842 = vadd.f32 %v1810, 1.0
        %v1843 = vadd.f32 %v1811, 1.0
        %v1844 = vadd.f32 %v1812, 1.0
        %v1845 = vadd.f32 %v1813, 1.0
        %v1846 = vadd.f32 %v1814, 1.0
        %v1847 = vadd.f32 %v1815, 1.0
        %v1848 = vadd.f32 %v1816, 1.0
        %v1849 = vadd.f32 %v1817, 1.0
        %v1850 = vadd.f32 %v1818, 1.0
        %v1851 = vadd.f32 %v1819, 1.0
        %v1852 = vadd.f32 %v1820, 1.0
        %v1853 = vadd.f32 %v1821, 1.0
        %v1854 = vadd.f32 %v1822, 1.0
        %v1855 = vadd.f32 %v1823, 1.0
        %v1856 = vadd.f32 %v1824, 1.0
        %v1857 = vadd.f32 %v1825, 1.0
        %v1858 = vmul.f32 %v1730, %v1826
        %v1859 = vmul.f32 %v1731, %v1827
        %v1860 = vmul.f32 %v1732, %v1828
        %v1861 = vmul.f32 %v1733, %v1829
        %v1862 = vmul.f32 %v1734, %v1830
        %v1863 = vmul.f32 %v1735, %v1831
        %v1864 = vmul.f32 %v1736, %v1832
        %v1865 = vmul.f32 %v1737, %v1833
        %v1866 = vmul.f32 %v1738, %v1834
        %v1867 = vmul.f32 %v1739, %v1835
        %v1868 = vmul.f32 %v1740, %v1836
        %v1869 = vmul.f32 %v1741, %v1837
        %v1870 = vmul.f32 %v1742, %v1838
        %v1871 = vmul.f32 %v1743, %v1839
        %v1872 = vmul.f32 %v1744, %v1840
        %v1873 = vmul.f32 %v1745, %v1841
        %v1874 = vmul.f32 %v1746, %v1842
        %v1875 = vmul.f32 %v1747, %v1843
        %v1876 = vmul.f32 %v1748, %v1844
        %v1877 = vmul.f32 %v1749, %v1845
        %v1878 = vmul.f32 %v1750, %v1846
        %v1879 = vmul.f32 %v1751, %v1847
        %v1880 = vmul.f32 %v1752, %v1848
        %v1881 = vmul.f32 %v1753, %v1849
        %v1882 = vmul.f32 %v1754, %v1850
        %v1883 = vmul.f32 %v1755, %v1851
        %v1884 = vmul.f32 %v1756, %v1852
        %v1885 = vmul.f32 %v1757, %v1853
        %v1886 = vmul.f32 %v1758, %v1854
        %v1887 = vmul.f32 %v1759, %v1855
        %v1888 = vmul.f32 %v1760, %v1856
        %v1889 = vmul.f32 %v1761, %v1857
        %v1890 = vld [vmem:[%s7] sm:$0x7]
        %v1891 = vld [vmem:[%s8] sm:$0x7]
        %1893 = vset.pattern.permute.xlu0 0
        %1894 = vperm.xlu0 %1893, %v1891
        %v1895 = vpop.permute.xlu0 %1894
        %v1898 = vsel %vm805, %v1890, 0
        %1900 = vmatprep.subr.mxu0 0.0
        %1901 = vmatpush1.msra.mxu0 0.0
        %1902 = vmatprep.subr.mxu0 0.0
        %1903 = vmatpush1.msra.mxu0 0.0
        %1904 = vmatprep.subr.mxu0 0.0
        %1905 = vmatpush1.msra.mxu0 0.0
        %1906 = vmatprep.subr.mxu0 0.0
        %1907 = vmatpush1.msra.mxu0 0.0
        %1908 = vmatprep.subr.mxu0 0.0
        %1909 = vmatpush1.msra.mxu0 0.0
        %1910 = vmatprep.subr.mxu0 0.0
        %1911 = vmatpush1.msra.mxu0 0.0
        %1912 = vmatprep.subr.mxu0 0.0
        %1913 = vmatpush1.msra.mxu0 0.0
        %1914 = vmatprep.subr.mxu0 0.0
        %1915 = vmatpush1.msra.mxu0 0.0
        %1916 = vmatprep.subr.mxu0 0.0
        %1917 = vmatpush1.msra.mxu0 0.0
        %1918 = vmatprep.subr.mxu0 0.0
        %1919 = vmatpush1.msra.mxu0 0.0
        %1920 = vmatprep.subr.mxu0 0.0
        %1921 = vmatpush1.msra.mxu0 0.0
        %1922 = vmatprep.subr.mxu0 0.0
        %1923 = vmatpush1.msra.mxu0 0.0
        %1924 = vmatprep.subr.mxu0 %v1883
        %1925 = vmatpush1.msra.mxu0 %v1882
        %1926 = vmatprep.subr.mxu0 %v1875
        %1927 = vmatpush1.msra.mxu0 %v1874
        %1928 = vmatprep.subr.mxu0 %v1867
        %1929 = vmatpush1.msra.mxu0 %v1866
        %1930 = vmatprep.subr.mxu0 %v1859
        %1931 = vmatpush1.msra.mxu0 %v1858
        %1932 = vmatprep.subr.mxu0 0.0
        %1933 = vmatpush2.msra.mxu0 0.0
        %1934 = vmatprep.subr.mxu0 0.0
        %1935 = vmatpush2.msra.mxu0 0.0
        %1936 = vmatprep.subr.mxu0 0.0
        %1937 = vmatpush2.msra.mxu0 0.0
        %1938 = vmatprep.subr.mxu0 0.0
        %1939 = vmatpush2.msra.mxu0 0.0
        %1940 = vmatprep.subr.mxu0 0.0
        %1941 = vmatpush2.msra.mxu0 0.0
        %1942 = vmatprep.subr.mxu0 0.0
        %1943 = vmatpush2.msra.mxu0 0.0
        %1944 = vmatprep.subr.mxu0 0.0
        %1945 = vmatpush2.msra.mxu0 0.0
        %1946 = vmatprep.subr.mxu0 0.0
        %1947 = vmatpush2.msra.mxu0 0.0
        %1948 = vmatprep.subr.mxu0 0.0
        %1949 = vmatpush2.msra.mxu0 0.0
        %1950 = vmatprep.subr.mxu0 0.0
        %1951 = vmatpush2.msra.mxu0 0.0
        %1952 = vmatprep.subr.mxu0 0.0
        %1953 = vmatpush2.msra.mxu0 0.0
        %1954 = vmatprep.subr.mxu0 0.0
        %1955 = vmatpush2.msra.mxu0 0.0
        %1956 = vmatprep.subr.mxu0 0.0
        %1957 = vmatpush2.msra.mxu0 0.0
        %1958 = vmatprep.subr.mxu0 0.0
        %1959 = vmatpush2.msra.mxu0 0.0
        %1960 = vmatprep.subr.mxu0 0.0
        %1961 = vmatpush2.msra.mxu0 0.0
        %1962 = vmatprep.subr.mxu0 0.0
        %1963 = vmatpush2.msra.mxu0 0.0
        %1964 = vmatprep.mubr.f32.mxu0 0.0
        %1965 = vmatmul.mubr.f32.gmra.mxu0 %v1898
        %v1966 = vpop.f32.mrf.mxu0
        %v1967 = vadd.f32 %v1895, %v1966
        %v1968 = vpop.f32.mrf.mxu0
        %v1969 = vadd.f32 %v1895, %v1968
        %1970 = vdwg.mxu0
        %1971 = vmatprep.subr.mxu0 0.0
        %1972 = vmatpush1.msra.mxu0 0.0
        %1973 = vmatprep.subr.mxu0 0.0
        %1974 = vmatpush1.msra.mxu0 0.0
        %1975 = vmatprep.subr.mxu0 0.0
        %1976 = vmatpush1.msra.mxu0 0.0
        %1977 = vmatprep.subr.mxu0 0.0
        %1978 = vmatpush1.msra.mxu0 0.0
        %1979 = vmatprep.subr.mxu0 0.0
        %1980 = vmatpush1.msra.mxu0 0.0
        %1981 = vmatprep.subr.mxu0 0.0
        %1982 = vmatpush1.msra.mxu0 0.0
        %1983 = vmatprep.subr.mxu0 0.0
        %1984 = vmatpush1.msra.mxu0 0.0
        %1985 = vmatprep.subr.mxu0 0.0
        %1986 = vmatpush1.msra.mxu0 0.0
        %1987 = vmatprep.subr.mxu0 0.0
        %1988 = vmatpush1.msra.mxu0 0.0
        %1989 = vmatprep.subr.mxu0 0.0
        %1990 = vmatpush1.msra.mxu0 0.0
        %1991 = vmatprep.subr.mxu0 0.0
        %1992 = vmatpush1.msra.mxu0 0.0
        %1993 = vmatprep.subr.mxu0 0.0
        %1994 = vmatpush1.msra.mxu0 0.0
        %1995 = vmatprep.subr.mxu0 %v1885
        %1996 = vmatpush1.msra.mxu0 %v1884
        %1997 = vmatprep.subr.mxu0 %v1877
        %1998 = vmatpush1.msra.mxu0 %v1876
        %1999 = vmatprep.subr.mxu0 %v1869
        %2000 = vmatpush1.msra.mxu0 %v1868
        %2001 = vmatprep.subr.mxu0 %v1861
        %2002 = vmatpush1.msra.mxu0 %v1860
        %2003 = vmatprep.subr.mxu0 0.0
        %2004 = vmatpush2.msra.mxu0 0.0
        %2005 = vmatprep.subr.mxu0 0.0
        %2006 = vmatpush2.msra.mxu0 0.0
        %2007 = vmatprep.subr.mxu0 0.0
        %2008 = vmatpush2.msra.mxu0 0.0
        %2009 = vmatprep.subr.mxu0 0.0
        %2010 = vmatpush2.msra.mxu0 0.0
        %2011 = vmatprep.subr.mxu0 0.0
        %2012 = vmatpush2.msra.mxu0 0.0
        %2013 = vmatprep.subr.mxu0 0.0
        %2014 = vmatpush2.msra.mxu0 0.0
        %2015 = vmatprep.subr.mxu0 0.0
        %2016 = vmatpush2.msra.mxu0 0.0
        %2017 = vmatprep.subr.mxu0 0.0
        %2018 = vmatpush2.msra.mxu0 0.0
        %2019 = vmatprep.subr.mxu0 0.0
        %2020 = vmatpush2.msra.mxu0 0.0
        %2021 = vmatprep.subr.mxu0 0.0
        %2022 = vmatpush2.msra.mxu0 0.0
        %2023 = vmatprep.subr.mxu0 0.0
        %2024 = vmatpush2.msra.mxu0 0.0
        %2025 = vmatprep.subr.mxu0 0.0
        %2026 = vmatpush2.msra.mxu0 0.0
        %2027 = vmatprep.subr.mxu0 0.0
        %2028 = vmatpush2.msra.mxu0 0.0
        %2029 = vmatprep.subr.mxu0 0.0
        %2030 = vmatpush2.msra.mxu0 0.0
        %2031 = vmatprep.subr.mxu0 0.0
        %2032 = vmatpush2.msra.mxu0 0.0
        %2033 = vmatprep.subr.mxu0 0.0
        %2034 = vmatpush2.msra.mxu0 0.0
        %2035 = vmatprep.mubr.f32.mxu0 0.0
        %2036 = vmatmul.mubr.f32.gmra.mxu0 %v1898
        %v2037 = vpop.f32.mrf.mxu0
        %v2038 = vadd.f32 %v1895, %v2037
        %v2039 = vpop.f32.mrf.mxu0
        %v2040 = vadd.f32 %v1895, %v2039
        %2041 = vdwg.mxu0
        %2042 = vmatprep.subr.mxu0 0.0
        %2043 = vmatpush1.msra.mxu0 0.0
        %2044 = vmatprep.subr.mxu0 0.0
        %2045 = vmatpush1.msra.mxu0 0.0
        %2046 = vmatprep.subr.mxu0 0.0
        %2047 = vmatpush1.msra.mxu0 0.0
        %2048 = vmatprep.subr.mxu0 0.0
        %2049 = vmatpush1.msra.mxu0 0.0
        %2050 = vmatprep.subr.mxu0 0.0
        %2051 = vmatpush1.msra.mxu0 0.0
        %2052 = vmatprep.subr.mxu0 0.0
        %2053 = vmatpush1.msra.mxu0 0.0
        %2054 = vmatprep.subr.mxu0 0.0
        %2055 = vmatpush1.msra.mxu0 0.0
        %2056 = vmatprep.subr.mxu0 0.0
        %2057 = vmatpush1.msra.mxu0 0.0
        %2058 = vmatprep.subr.mxu0 0.0
        %2059 = vmatpush1.msra.mxu0 0.0
        %2060 = vmatprep.subr.mxu0 0.0
        %2061 = vmatpush1.msra.mxu0 0.0
        %2062 = vmatprep.subr.mxu0 0.0
        %2063 = vmatpush1.msra.mxu0 0.0
        %2064 = vmatprep.subr.mxu0 0.0
        %2065 = vmatpush1.msra.mxu0 0.0
        %2066 = vmatprep.subr.mxu0 %v1887
        %2067 = vmatpush1.msra.mxu0 %v1886
        %2068 = vmatprep.subr.mxu0 %v1879
        %2069 = vmatpush1.msra.mxu0 %v1878
        %2070 = vmatprep.subr.mxu0 %v1871
        %2071 = vmatpush1.msra.mxu0 %v1870
        %2072 = vmatprep.subr.mxu0 %v1863
        %2073 = vmatpush1.msra.mxu0 %v1862
        %2074 = vmatprep.subr.mxu0 0.0
        %2075 = vmatpush2.msra.mxu0 0.0
        %2076 = vmatprep.subr.mxu0 0.0
        %2077 = vmatpush2.msra.mxu0 0.0
        %2078 = vmatprep.subr.mxu0 0.0
        %2079 = vmatpush2.msra.mxu0 0.0
        %2080 = vmatprep.subr.mxu0 0.0
        %2081 = vmatpush2.msra.mxu0 0.0
        %2082 = vmatprep.subr.mxu0 0.0
        %2083 = vmatpush2.msra.mxu0 0.0
        %2084 = vmatprep.subr.mxu0 0.0
        %2085 = vmatpush2.msra.mxu0 0.0
        %2086 = vmatprep.subr.mxu0 0.0
        %2087 = vmatpush2.msra.mxu0 0.0
        %2088 = vmatprep.subr.mxu0 0.0
        %2089 = vmatpush2.msra.mxu0 0.0
        %2090 = vmatprep.subr.mxu0 0.0
        %2091 = vmatpush2.msra.mxu0 0.0
        %2092 = vmatprep.subr.mxu0 0.0
        %2093 = vmatpush2.msra.mxu0 0.0
        %2094 = vmatprep.subr.mxu0 0.0
        %2095 = vmatpush2.msra.mxu0 0.0
        %2096 = vmatprep.subr.mxu0 0.0
        %2097 = vmatpush2.msra.mxu0 0.0
        %2098 = vmatprep.subr.mxu0 0.0
        %2099 = vmatpush2.msra.mxu0 0.0
        %2100 = vmatprep.subr.mxu0 0.0
        %2101 = vmatpush2.msra.mxu0 0.0
        %2102 = vmatprep.subr.mxu0 0.0
        %2103 = vmatpush2.msra.mxu0 0.0
        %2104 = vmatprep.subr.mxu0 0.0
        %2105 = vmatpush2.msra.mxu0 0.0
        %2106 = vmatprep.mubr.f32.mxu0 0.0
        %2107 = vmatmul.mubr.f32.gmra.mxu0 %v1898
        %v2108 = vpop.f32.mrf.mxu0
        %v2109 = vadd.f32 %v1895, %v2108
        %v2110 = vpop.f32.mrf.mxu0
        %v2111 = vadd.f32 %v1895, %v2110
        %2112 = vdwg.mxu0
        %2113 = vmatprep.subr.mxu0 0.0
        %2114 = vmatpush1.msra.mxu0 0.0
        %2115 = vmatprep.subr.mxu0 0.0
        %2116 = vmatpush1.msra.mxu0 0.0
        %2117 = vmatprep.subr.mxu0 0.0
        %2118 = vmatpush1.msra.mxu0 0.0
        %2119 = vmatprep.subr.mxu0 0.0
        %2120 = vmatpush1.msra.mxu0 0.0
        %2121 = vmatprep.subr.mxu0 0.0
        %2122 = vmatpush1.msra.mxu0 0.0
        %2123 = vmatprep.subr.mxu0 0.0
        %2124 = vmatpush1.msra.mxu0 0.0
        %2125 = vmatprep.subr.mxu0 0.0
        %2126 = vmatpush1.msra.mxu0 0.0
        %2127 = vmatprep.subr.mxu0 0.0
        %2128 = vmatpush1.msra.mxu0 0.0
        %2129 = vmatprep.subr.mxu0 0.0
        %2130 = vmatpush1.msra.mxu0 0.0
        %2131 = vmatprep.subr.mxu0 0.0
        %2132 = vmatpush1.msra.mxu0 0.0
        %2133 = vmatprep.subr.mxu0 0.0
        %2134 = vmatpush1.msra.mxu0 0.0
        %2135 = vmatprep.subr.mxu0 0.0
        %2136 = vmatpush1.msra.mxu0 0.0
        %2137 = vmatprep.subr.mxu0 %v1889
        %2138 = vmatpush1.msra.mxu0 %v1888
        %2139 = vmatprep.subr.mxu0 %v1881
        %2140 = vmatpush1.msra.mxu0 %v1880
        %2141 = vmatprep.subr.mxu0 %v1873
        %2142 = vmatpush1.msra.mxu0 %v1872
        %2143 = vmatprep.subr.mxu0 %v1865
        %2144 = vmatpush1.msra.mxu0 %v1864
        %2145 = vmatprep.subr.mxu0 0.0
        %2146 = vmatpush2.msra.mxu0 0.0
        %2147 = vmatprep.subr.mxu0 0.0
        %2148 = vmatpush2.msra.mxu0 0.0
        %2149 = vmatprep.subr.mxu0 0.0
        %2150 = vmatpush2.msra.mxu0 0.0
        %2151 = vmatprep.subr.mxu0 0.0
        %2152 = vmatpush2.msra.mxu0 0.0
        %2153 = vmatprep.subr.mxu0 0.0
        %2154 = vmatpush2.msra.mxu0 0.0
        %2155 = vmatprep.subr.mxu0 0.0
        %2156 = vmatpush2.msra.mxu0 0.0
        %2157 = vmatprep.subr.mxu0 0.0
        %2158 = vmatpush2.msra.mxu0 0.0
        %2159 = vmatprep.subr.mxu0 0.0
        %2160 = vmatpush2.msra.mxu0 0.0
        %2161 = vmatprep.subr.mxu0 0.0
        %2162 = vmatpush2.msra.mxu0 0.0
        %2163 = vmatprep.subr.mxu0 0.0
        %2164 = vmatpush2.msra.mxu0 0.0
        %2165 = vmatprep.subr.mxu0 0.0
        %2166 = vmatpush2.msra.mxu0 0.0
        %2167 = vmatprep.subr.mxu0 0.0
        %2168 = vmatpush2.msra.mxu0 0.0
        %2169 = vmatprep.subr.mxu0 0.0
        %2170 = vmatpush2.msra.mxu0 0.0
        %2171 = vmatprep.subr.mxu0 0.0
        %2172 = vmatpush2.msra.mxu0 0.0
        %2173 = vmatprep.subr.mxu0 0.0
        %2174 = vmatpush2.msra.mxu0 0.0
        %2175 = vmatprep.subr.mxu0 0.0
        %2176 = vmatpush2.msra.mxu0 0.0
        %2177 = vmatprep.mubr.f32.mxu0 0.0
        %2178 = vmatmul.mubr.f32.gmra.mxu0 %v1898
        %v2179 = vpop.f32.mrf.mxu0
        %v2180 = vadd.f32 %v1895, %v2179
        %v2181 = vpop.f32.mrf.mxu0
        %v2182 = vadd.f32 %v1895, %v2181
        %2183 = vdwg.mxu0
        %v2192 = vcombine.low %v1967, %v1969
        %v2193 = vcombine.low %v2038, %v2040
        %v2194 = vcombine.low %v2109, %v2111
        %v2195 = vcombine.low %v2180, %v2182
        %2200 = vst [vmem:[%s348] sm:$0x77] %v2192
        %2201 = vst [vmem:[%s348 + $0x8] sm:$0x77] %v2193
        %2202 = vst [vmem:[%s348 + $0x10] sm:$0x77] %v2194
        %2203 = vst [vmem:[%s348 + $0x18] sm:$0x77] %v2195
        %s2204 = sand.u32 %s228, 1
        %s2205 = scalar_lea.sflag [#allocation4], %s2204
        %s2206 = sand.u32 %s228, 1
        %s2207 = smul.addr %s2206, 32
        %s2208 = scalar_lea.vmem [#allocation5], %s2207
        // Predicated region
        $region61: #{tpu_custom_call.1} parent=55 // pred_check
          %p2209 = pneg %p238
        $region62: #{tpu_custom_call.1} parent=55 // pred_check_branch
          %2211 = sbr.rel (%p2209) target = $region64
        $region63: #{tpu_custom_call.1} parent=55 // pred_region
          %s2212 = smul.u32 8, %s26
          %s2214 = ssub.s32 512, 512
          %2215 = vsyncadd %s2205, %s2214
          %s2216 = smul.addr %s2212, 64
          %s2217 = scalar_lea.hbm %s9, %s2216
          %s2219 = sshll.u32 %s2208, 4
          %s2220 = int_to_ptr.vmem [resolvable:$true] %s2219
          %2222 = dma.vmem_to_hbm [thread:$0]  %s2220, 512, %s2217, %s2205
        $region64: #{tpu_custom_call.1} parent=55 // pred_fallthru
          _
      $region56: #{tpu_custom_call.1} parent=5 // pred_fallthru
        _
      %p2223 = scmp.le.s32.totalorder 2, %s21
      // Predicated region
      $region65: #{tpu_custom_call.1} parent=5 // pred_check
        %p2224 = pneg %p2223
      $region66: #{tpu_custom_call.1} parent=5 // pred_check_branch
        %2226 = sbr.rel (%p2224) target = $region68
      $region67: #{tpu_custom_call.1} parent=5 // pred_region
        %s2227 = ssub.s32 %s21, 2
        // Predicated region
        $region69: #{tpu_custom_call.1} parent=67 // pred_check
          %p2228 = pneg %p244
        $region70: #{tpu_custom_call.1} parent=67 // pred_check_branch
          %2230 = sbr.rel (%p2228) target = $region72
        $region71: #{tpu_custom_call.1} parent=67 // pred_region
          %s2231 = sand.u32 %s229, 1
          %s2232 = scalar_lea.sflag [#allocation4], %s2231
          %s2233 = sand.u32 %s229, 1
          %s2234 = smul.addr %s2233, 32
          %s2235 = scalar_lea.vmem [#allocation5], %s2234
          %2236 = dma.done %s2232, 512
        $region72: #{tpu_custom_call.1} parent=67 // pred_fallthru
          _
      $region68: #{tpu_custom_call.1} parent=5 // pred_fallthru
        _
    $region6: #{tpu_custom_call.1} parent=1 // loop_footer
      %s25 = sadd.s32 1, %s21
    $region7: #{tpu_custom_call.1} parent=1 // loop_footer_branch
      %20 = sbr.rel target = $region3
    $region8: #{tpu_custom_call.1} parent=1 // loop_exit
      _
    %2237 = vsyncpa [#allocation3], 1
    %s2238 = scalar_lea.sflag [#allocation3], 1
    %2239 = vsyncpa %s2238, 1
    %2240 = vsyncpa [#allocation4], 1
    %s2241 = scalar_lea.sflag [#allocation4], 1
    %2242 = vsyncpa %s2241, 1

</llo_original>
